<compile_context>
chip_gen: v7x
topology: tpu7x:2x2x1
jax: 0.10.0
libtpu: 0.0.40
codegen_flags: <defaults>
</compile_context>

<pallas_src>
import functools

import jax
import jax.numpy as jnp
from jax import lax
from jax.experimental import pallas as pl
from jax.experimental.pallas import tpu as pltpu


# ------------------------------ fused kernel ------------------------------ #
def _fused_kernel(x12_ref, w1_ref, b1_ref, w2_ref, b2_ref, out_ref, *, bt, oh, ow):
    """B_TILE images: Conv2d(k3,s2,p1) + ConvTranspose2d(k3,s2,p1), fully fused.

    x12_ref : (bt, oh+2, ow, 384)  packed input,
              channel = sw*128 + (ph*2+pw)*32 + ci,
              value   = x_pad[2*row + ph, 2*(col+sw) + pw, ci]
    w1_ref  : (1152, 64)  layer-1 block weight (zero-padded taps); output col
              group d = dh*2+dw is conv activation shifted by (dh, dw)
    b1_ref  : (1, 64)     conv bias tiled over the 4 shift groups
    w2_ref  : (64, 32)    layer-2 block weight: shift-groups x output-parity
    b2_ref  : (1, 32)     deconv bias tiled over the 4 output parities
    out_ref : (bt, oh*ow, 32)  output channel = (hp*2+wp)*8 + co
    """
    m = bt * oh * ow
    k1 = w1_ref.shape[0]

    # ---- layer 1 LHS: 3 row-shifted windows, leading-dim slices (cheap), ----
    # ---- lane concat of 3-vreg-column pieces (aligned, no relayout).     ----
    wins = [x12_ref[:, sh:sh + oh] for sh in range(3)]      # each (bt, oh, ow, 384)
    lhs1 = jnp.concatenate(wins, axis=-1).reshape(m, k1)    # (M, 1152)

    # ---- layer 1 (and its 3 shifted copies) in ONE MXU dot ------------------
    y1x4 = jnp.dot(lhs1, w1_ref[...], preferred_element_type=jnp.float32)
    y1x4 = y1x4 + b1_ref[...]                                # (M, 64)

    # ---- layer 2: ONE dot over K=64, N=32 (all four output parities) --------
    # Out-of-range shifted activations only feed output row 2*oh-1 / col 2*ow-1,
    # which the wrapper crops away.
    out = jnp.dot(y1x4, w2_ref[...], preferred_element_type=jnp.float32)
    out = out + b2_ref[...]                                  # (M, 32)

    out_ref[...] = out.reshape(out_ref.shape)


# ------------------------------ wrapper ------------------------------------ #
def _pick_batch_tile(n, m_spatial, target_rows=512):
    """Largest divisor of n with bt*m_spatial <= target, preferring >=2 grid steps."""
    divs = [d for d in range(1, n + 1) if n % d == 0]
    fit = [d for d in divs if d * m_spatial <= target_rows] or [1]
    multi = [d for d in fit if n // d >= 2]
    return max(multi) if multi else max(fit)


def fused_conv_deconv(x, w1, b1, w2, b2):
    """x: (N, 32, H, W) NCHW.  Returns (N, 8, H-1, W-1) NCHW."""
    N, cin, H, W = x.shape
    c1, cin1, KH, KW = w1.shape            # Conv2d weight        (16, 32, 3, 3)
    cin2, c2, KH2, KW2 = w2.shape          # ConvTranspose2d wgt  (16,  8, 3, 3)
    assert cin1 == cin and cin2 == c1 and (KH, KW, KH2, KW2) == (3, 3, 3, 3)
    assert H % 2 == 0 and W % 2 == 0

    oh, ow = H // 2, W // 2                # conv1 output spatial
    msp = oh * ow
    bt = _pick_batch_tile(N, msp)

    # -------- input packing (small, fused wrapper glue) ----------------------
    xh = jnp.transpose(x, (0, 2, 3, 1))                          # NHWC
    xp = jnp.pad(xh, ((0, 0), (1, 3), (1, 3), (0, 0)))           # (N, H+4, W+4, cin)
    p2 = oh + 2
    # parity split: x4[n, r, c, (ph*2+pw)*cin + ci] = xp[n, 2r+ph, 2c+pw, ci]
    x4 = xp.reshape(N, p2, 2, p2, 2, cin)
    x4 = jnp.transpose(x4, (0, 1, 3, 2, 4, 5)).reshape(N, p2, p2, 4 * cin)
    # pack the 3 column shifts into lanes -> 384-lane, fully (8,128)-aligned
    x12 = jnp.concatenate([x4[:, :, 0:ow, :],
                           x4[:, :, 1:ow + 1, :],
                           x4[:, :, 2:ow + 2, :]], axis=-1)      # (N, oh+2, ow, 12*cin)

    # -------- block weights ---------------------------------------------------
    # layer 1: rows = (sh, sw, ph, pw, ci); cols = (d = dh*2+dw, co)
    w1m = jnp.transpose(w1, (2, 3, 1, 0))        # [kh, kw] -> (cin, c1)
    zero1 = jnp.zeros((cin, c1), w1.dtype)
    row_blocks = []
    for sh in range(3):
        for sw in range(3):
            for ph in range(2):
                for pw in range(2):
                    col_blocks = []
                    for dh in range(2):
                        for dw in range(2):
                            kh = 2 * (sh - dh) + ph
                            kw = 2 * (sw - dw) + pw
                            ok = (0 <= kh <= 2) and (0 <= kw <= 2)
                            col_blocks.append(w1m[kh, kw] if ok else zero1)
                    row_blocks.append(jnp.concatenate(col_blocks, axis=1))
    w1big = jnp.concatenate(row_blocks, axis=0)                   # (36*cin, 4*c1)

    # layer 2: rows = (d = dh*2+dw, ci); cols = (parity = hp*2+wp, co)
    w2m = jnp.transpose(w2, (2, 3, 0, 1))        # [kh, kw] -> (c1, c2)
    zero2 = jnp.zeros((c1, c2), w2.dtype)
    k_of = {(0, 0): 1, (0, 1): None, (1, 0): 2, (1, 1): 0}   # (out parity, shift) -> tap
    rows = []
    for dh in range(2):
        for dw in range(2):
            cols = []
            for hp in range(2):
                for wp in range(2):
                    kh, kw = k_of[(hp, dh)], k_of[(wp, dw)]
                    cols.append(zero2 if (kh is None or kw is None) else w2m[kh, kw])
            rows.append(jnp.concatenate(cols, axis=1))
    w2big = jnp.concatenate(rows, axis=0)                         # (4*c1, 4*c2)

    b1big = jnp.tile(b1, 4).reshape(1, 4 * c1)
    b2big = jnp.tile(b2, 4).reshape(1, 4 * c2)

    k1 = 36 * cin
    flops = N * msp * 2 * (k1 * 4 * c1 + 4 * c1 * 4 * c2)
    bytes_accessed = 4 * (N * (oh + 2) * ow * 12 * cin + k1 * 4 * c1
                          + 4 * c1 * 4 * c2 + 4 * c1 + 4 * c2 + N * msp * 4 * c2)

    out = pl.pallas_call(
        functools.partial(_fused_kernel, bt=bt, oh=oh, ow=ow),
        out_shape=jax.ShapeDtypeStruct((N, msp, 4 * c2), jnp.float32),
        grid_spec=pltpu.PrefetchScalarGridSpec(
            num_scalar_prefetch=0,
            grid=(N // bt,),
            in_specs=[
                pl.BlockSpec((bt, oh + 2, ow, 12 * cin), lambda n: (n, 0, 0, 0)),
                pl.BlockSpec((k1, 4 * c1), lambda n: (0, 0)),
                pl.BlockSpec((1, 4 * c1), lambda n: (0, 0)),
                pl.BlockSpec((4 * c1, 4 * c2), lambda n: (0, 0)),
                pl.BlockSpec((1, 4 * c2), lambda n: (0, 0)),
            ],
            out_specs=pl.BlockSpec((bt, msp, 4 * c2), lambda n: (n, 0, 0)),
        ),
        compiler_params=pltpu.CompilerParams(
            dimension_semantics=("parallel",)),
        cost_estimate=pl.CostEstimate(flops=flops, transcendentals=0,
                                      bytes_accessed=bytes_accessed),
    )(x12, w1big, b1big, w2big, b2big)

    # -------- output decode: interleave parities, crop, back to NCHW ---------
    o = out.reshape(N, oh, ow, 2, 2, c2)               # (n, a, b, hp, wp, c)
    o = jnp.transpose(o, (0, 1, 3, 2, 4, 5))           # (n, a, hp, b, wp, c)
    o = o.reshape(N, 2 * oh, 2 * ow, c2)[:, :2 * oh - 1, :2 * ow - 1, :]
    return jnp.transpose(o, (0, 3, 1, 2))              # NCHW


@jax.jit
def model_forward(x, params):
    w1, b1, w2, b2 = params
    return fused_conv_deconv(x, w1, b1, w2, b2)


# ------------------------------ pure-JAX reference ------------------------- #
def model_forward_ref(x, params):
    w1, b1, w2, b2 = params
    v1 = lax.conv_general_dilated(
        x, w1, window_strides=(2, 2), padding=((1, 1), (1, 1)),
        dimension_numbers=("NCHW", "OIHW", "NCHW")) + b1[None, :, None, None]
    w2_eq = jnp.transpose(jnp.flip(w2, axis=(2, 3)), (1, 0, 2, 3))
    v2 = lax.conv_general_dilated(
        v1, w2_eq, window_strides=(1, 1), padding=((1, 1), (1, 1)),
        lhs_dilation=(2, 2),
        dimension_numbers=("NCHW", "OIHW", "NCHW")) + b2[None, :, None, None]
    return v2


if __name__ == "__main__":
    key = jax.random.PRNGKey(0)
    k_x, k_w1, k_b1, k_w2, k_b2 = jax.random.split(key, 5)

    # channels fixed by the module (32 -> 16 -> 8); small spatial, batch 8 so
    # B_TILE=4 gives M=256 rows per step and a 2-step parallel grid.
    N, H, W = 8, 16, 16
    x = jax.random.normal(k_x, (N, 32, H, W), dtype=jnp.float32)

    w1 = 0.1 * jax.random.normal(k_w1, (16, 32, 3, 3), dtype=jnp.float32)   # Conv2d
    b1 = 0.1 * jax.random.normal(k_b1, (16,), dtype=jnp.float32)
    w2 = 0.1 * jax.random.normal(k_w2, (16, 8, 3, 3), dtype=jnp.float32)    # ConvTranspose2d
    b2 = 0.1 * jax.random.normal(k_b2, (8,), dtype=jnp.float32)
    params = (w1, b1, w2, b2)

    out = jax.block_until_ready(model_forward(x, params))
    assert out.shape == (N, 8, H - 1, W - 1), out.shape

    ref = jax.block_until_ready(model_forward_ref(x, params))
    max_err = float(jnp.max(jnp.abs(out - ref)))
    assert jnp.allclose(out, ref, rtol=1e-4, atol=1e-4), max_err

    print("KERNEL_OK")
</pallas_src>

<mosaic_0001>
module attributes {stable_mosaic.version = 11 : i64} {
  func.func @_fused_kernel(%arg0: i32, %arg1: memref<4x10x8x384xf32, #tpu.memory_space<vmem>>, %arg2: memref<1152x64xf32, #tpu.memory_space<vmem>>, %arg3: memref<1x64xf32, #tpu.memory_space<vmem>>, %arg4: memref<64x32xf32, #tpu.memory_space<vmem>>, %arg5: memref<1x32xf32, #tpu.memory_space<vmem>>, %arg6: memref<4x64x32xf32, #tpu.memory_space<vmem>>) attributes {dimension_semantics = [#tpu.dimension_semantics<parallel>], iteration_bounds = array<i64: 2>, scalar_prefetch = 0 : i64, scratch_operands = 0 : i64, tpu.core_type = #tpu.core_type<tc>, window_params = [{transform_indices = @transform_0, window_bounds = array<i64: 4, 10, 8, 384>}, {pipeline_mode = #tpu.pipeline_mode<synchronous>, transform_indices = @transform_1, window_bounds = array<i64: 1152, 64>}, {pipeline_mode = #tpu.pipeline_mode<synchronous>, transform_indices = @transform_2, window_bounds = array<i64: 1, 64>}, {pipeline_mode = #tpu.pipeline_mode<synchronous>, transform_indices = @transform_3, window_bounds = array<i64: 64, 32>}, {pipeline_mode = #tpu.pipeline_mode<synchronous>, transform_indices = @transform_4, window_bounds = array<i64: 1, 32>}, {transform_indices = @transform_5, window_bounds = array<i64: 4, 64, 32>}]} {
    %c0 = arith.constant 0 : index
    %c0_0 = arith.constant 0 : index
    %c0_1 = arith.constant 0 : index
    %c0_2 = arith.constant 0 : index
    %0 = vector.load %arg1[%c0, %c0_0, %c0_1, %c0_2] : memref<4x10x8x384xf32, #tpu.memory_space<vmem>>, vector<4x8x8x384xf32>
    %c0_3 = arith.constant 0 : index
    %c1 = arith.constant 1 : index
    %c0_4 = arith.constant 0 : index
    %c0_5 = arith.constant 0 : index
    %1 = vector.load %arg1[%c0_3, %c1, %c0_4, %c0_5] : memref<4x10x8x384xf32, #tpu.memory_space<vmem>>, vector<4x8x8x384xf32>
    %c0_6 = arith.constant 0 : index
    %c2 = arith.constant 2 : index
    %c0_7 = arith.constant 0 : index
    %c0_8 = arith.constant 0 : index
    %2 = vector.load %arg1[%c0_6, %c2, %c0_7, %c0_8] : memref<4x10x8x384xf32, #tpu.memory_space<vmem>>, vector<4x8x8x384xf32>
    %3 = tpu.concatenate %0, %1, %2 in 3 : vector<4x8x8x384xf32>, vector<4x8x8x384xf32>, vector<4x8x8x384xf32> -> vector<4x8x8x1152xf32>
    %4 = vector.shape_cast %3 : vector<4x8x8x1152xf32> to vector<256x1152xf32>
    %c0_9 = arith.constant 0 : index
    %c0_10 = arith.constant 0 : index
    %5 = vector.load %arg2[%c0_9, %c0_10] : memref<1152x64xf32, #tpu.memory_space<vmem>>, vector<1152x64xf32>
    %cst = arith.constant dense<0.000000e+00> : vector<256x64xf32>
    %6 = tpu.matmul %4, %5, %cst {dimension_numbers = #tpu.dot_dimension_numbers<[1], [0], [0], [1], [0, 0, 1, 1], [], []>} : vector<256x1152xf32>, vector<1152x64xf32>, vector<256x64xf32> -> vector<256x64xf32>
    %c0_11 = arith.constant 0 : index
    %c0_12 = arith.constant 0 : index
    %7 = vector.load %arg3[%c0_11, %c0_12] : memref<1x64xf32, #tpu.memory_space<vmem>>, vector<1x64xf32>
    %8 = vector.broadcast %7 : vector<1x64xf32> to vector<256x64xf32>
    %9 = arith.addf %6, %8 : vector<256x64xf32>
    %c0_13 = arith.constant 0 : index
    %c0_14 = arith.constant 0 : index
    %10 = vector.load %arg4[%c0_13, %c0_14] : memref<64x32xf32, #tpu.memory_space<vmem>>, vector<64x32xf32>
    %cst_15 = arith.constant dense<0.000000e+00> : vector<256x32xf32>
    %11 = tpu.matmul %9, %10, %cst_15 {dimension_numbers = #tpu.dot_dimension_numbers<[1], [0], [0], [1], [0, 0, 1, 1], [], []>} : vector<256x64xf32>, vector<64x32xf32>, vector<256x32xf32> -> vector<256x32xf32>
    %c0_16 = arith.constant 0 : index
    %c0_17 = arith.constant 0 : index
    %12 = vector.load %arg5[%c0_16, %c0_17] : memref<1x32xf32, #tpu.memory_space<vmem>>, vector<1x32xf32>
    %13 = vector.broadcast %12 : vector<1x32xf32> to vector<256x32xf32>
    %14 = arith.addf %11, %13 : vector<256x32xf32>
    %15 = vector.shape_cast %14 : vector<256x32xf32> to vector<4x64x32xf32>
    %c0_18 = arith.constant 0 : index
    %c0_19 = arith.constant 0 : index
    %c0_20 = arith.constant 0 : index
    %16 = vector.load %arg6[%c0_18, %c0_19, %c0_20] : memref<4x64x32xf32, #tpu.memory_space<vmem>>, vector<4x64x32xf32>
    tpu.vector_store %arg6[%c0_18, %c0_19, %c0_20], %15 {strides = array<i32>} : memref<4x64x32xf32, #tpu.memory_space<vmem>>, vector<4x64x32xf32>,
    return
  }
  func.func @transform_0(%arg0: i32) -> (i32, i32, i32, i32) {
    %c0_i32 = arith.constant 0 : i32
    %c0_i32_0 = arith.constant 0 : i32
    %c0_i32_1 = arith.constant 0 : i32
    %c0_i32_2 = arith.constant 0 : i32
    return %arg0, %c0_i32, %c0_i32_0, %c0_i32_1 : i32, i32, i32, i32
  }
  func.func @transform_1(%arg0: i32) -> (i32, i32) {
    %c0_i32 = arith.constant 0 : i32
    %c0_i32_0 = arith.constant 0 : i32
    %c0_i32_1 = arith.constant 0 : i32
    return %c0_i32, %c0_i32_0 : i32, i32
  }
  func.func @transform_2(%arg0: i32) -> (i32, i32) {
    %c0_i32 = arith.constant 0 : i32
    %c0_i32_0 = arith.constant 0 : i32
    %c0_i32_1 = arith.constant 0 : i32
    return %c0_i32, %c0_i32_0 : i32, i32
  }
  func.func @transform_3(%arg0: i32) -> (i32, i32) {
    %c0_i32 = arith.constant 0 : i32
    %c0_i32_0 = arith.constant 0 : i32
    %c0_i32_1 = arith.constant 0 : i32
    return %c0_i32, %c0_i32_0 : i32, i32
  }
  func.func @transform_4(%arg0: i32) -> (i32, i32) {
    %c0_i32 = arith.constant 0 : i32
    %c0_i32_0 = arith.constant 0 : i32
    %c0_i32_1 = arith.constant 0 : i32
    return %c0_i32, %c0_i32_0 : i32, i32
  }
  func.func @transform_5(%arg0: i32) -> (i32, i32, i32) {
    %c0_i32 = arith.constant 0 : i32
    %c0_i32_0 = arith.constant 0 : i32
    %c0_i32_1 = arith.constant 0 : i32
    return %arg0, %c0_i32, %c0_i32_0 : i32, i32, i32
  }
}

</mosaic_0001>

<llo_original>
// kernel: tile.13
$region0: #{tile.13}
  #allocation0 [shape = 's32[1]{0}', space=sflag, size = 0x4, scoped, tag = 'scoped memory for tile.13']
  %s0 = inlined_call_operand.vmem [shape: f32[16], index: 0, kind: input, shape index: {}]
  %s1 = inlined_call_operand.vmem [shape: f32[4,16], index: 1, kind: output, shape index: {}]
  // Predicated region
  $region2: #{tile.13} parent=0 // pred_check
    _
  $region3: #{tile.13} parent=0 // pred_check_branch
    %3 = sbr.rel (0) target = $region5
  $region4: #{tile.13} parent=0 // pred_region
    _
  $region5: #{tile.13} parent=0 // pred_fallthru
    _
  %v4 = vld [vmem:[%s0] ss:$0 sm:$0xff]
  %5 = vst [vmem:[%s1] sm:$0xf] %v4

// kernel: tile.14
$region0: #{tile.14}
  %s0 = inlined_call_operand.vmem [shape: f32[4,16], index: 0, kind: input, shape index: {}]
  %s1 = inlined_call_operand.vmem [shape: f32[1,64], index: 1, kind: output, shape index: {}]
  $region1: #{tile.14} parent=0
    #allocation0 [shape = 'u8[4096]{0}', space=vmem, size = 0x1000, scoped, tag = 'scoped mem for output reshape']
    #allocation1 [shape = 'u8[4096]{0}', space=vmem, size = 0x1000, scoped, tag = 'scoped mem for input reshape']
    %s3 = sshllo.u32 0, 4
    %v4 = vld [vmem:[%s0] sm:%s3]
    %5 = vst [vmem:[#allocation1] sm:%s3] %v4
    %v6 = vld [vmem:[#allocation1] sm:$0x1]
    %vm7 = vcmask 130048
    %8 = vst.msk [vmem:[#allocation0] sm:$0x1] %vm7, %v6
    %s9 = scalar_lea.vmem [#allocation1], 3
    %v10 = vld [vmem:[%s9] sm:$0x1]
    %11 = vrot.lane.b32.xlu0 %v10, 48
    %v12 = vpop.permute.xlu0 %11
    %vm13 = vcmask 523648
    %14 = vst.msk [vmem:[#allocation0] sm:$0x1] %vm13, %v12
    %s15 = scalar_lea.vmem [#allocation1], 2
    %v16 = vld [vmem:[%s15] sm:$0x1]
    %17 = vrot.lane.b32.xlu0 %v16, 32
    %v18 = vpop.permute.xlu0 %17
    %vm19 = vcmask 392448
    %20 = vst.msk [vmem:[#allocation0] sm:$0x1] %vm19, %v18
    %s21 = scalar_lea.vmem [#allocation1], 1
    %v22 = vld [vmem:[%s21] sm:$0x1]
    %23 = vrot.lane.b32.xlu0 %v22, 16
    %v24 = vpop.permute.xlu0 %23
    %vm25 = vcmask 261248
    %26 = vst.msk [vmem:[#allocation0] sm:$0x1] %vm25, %v24
    %s28 = sshllo.u32 0, 1
    %v30 = vld [vmem:[#allocation0] sm:%s28]
    %s31 = sshllo.u32 0, 1
    %32 = vst [vmem:[%s1] sm:%s31] %v30

// kernel: tile.18
$region0: #{tile.18}
  #allocation0 [shape = 's32[1]{0}', space=sflag, size = 0x4, scoped, tag = 'scoped memory for tile.18']
  %s0 = inlined_call_operand.vmem [shape: f32[8], index: 0, kind: input, shape index: {}]
  %s1 = inlined_call_operand.vmem [shape: f32[4,8], index: 1, kind: output, shape index: {}]
  // Predicated region
  $region2: #{tile.18} parent=0 // pred_check
    _
  $region3: #{tile.18} parent=0 // pred_check_branch
    %3 = sbr.rel (0) target = $region5
  $region4: #{tile.18} parent=0 // pred_region
    _
  $region5: #{tile.18} parent=0 // pred_fallthru
    _
  %v4 = vld [vmem:[%s0] ss:$0 sm:$0xff]
  %5 = vst [vmem:[%s1] sm:$0xf] %v4

// kernel: tile.19
$region0: #{tile.19}
  %s0 = inlined_call_operand.vmem [shape: f32[4,8], index: 0, kind: input, shape index: {}]
  %s1 = inlined_call_operand.vmem [shape: f32[1,32], index: 1, kind: output, shape index: {}]
  $region1: #{tile.19} parent=0
    #allocation0 [shape = 'u8[4096]{0}', space=vmem, size = 0x1000, scoped, tag = 'scoped mem for output reshape']
    #allocation1 [shape = 'u8[4096]{0}', space=vmem, size = 0x1000, scoped, tag = 'scoped mem for input reshape']
    %s3 = sshllo.u32 0, 4
    %v4 = vld [vmem:[%s0] sm:%s3]
    %5 = vst [vmem:[#allocation1] sm:%s3] %v4
    %v6 = vld [vmem:[#allocation1] sm:$0x1]
    %vm7 = vcmask 64512
    %8 = vst.msk [vmem:[#allocation0] sm:$0x1] %vm7, %v6
    %s9 = scalar_lea.vmem [#allocation1], 3
    %v10 = vld [vmem:[%s9] sm:$0x1]
    %11 = vrot.lane.b32.xlu0 %v10, 24
    %v12 = vpop.permute.xlu0 %11
    %vm13 = vcmask 261312
    %14 = vst.msk [vmem:[#allocation0] sm:$0x1] %vm13, %v12
    %s15 = scalar_lea.vmem [#allocation1], 2
    %v16 = vld [vmem:[%s15] sm:$0x1]
    %17 = vrot.lane.b32.xlu0 %v16, 16
    %v18 = vpop.permute.xlu0 %17
    %vm19 = vcmask 195712
    %20 = vst.msk [vmem:[#allocation0] sm:$0x1] %vm19, %v18
    %s21 = scalar_lea.vmem [#allocation1], 1
    %v22 = vld [vmem:[%s21] sm:$0x1]
    %23 = vrot.lane.b32.xlu0 %v22, 8
    %v24 = vpop.permute.xlu0 %23
    %vm25 = vcmask 130112
    %26 = vst.msk [vmem:[#allocation0] sm:$0x1] %vm25, %v24
    %s28 = sshllo.u32 0, 1
    %v30 = vld [vmem:[#allocation0] sm:%s28]
    %s31 = sshllo.u32 0, 1
    %32 = vst [vmem:[%s1] sm:%s31] %v30

// kernel: model_forward.1
$region0: #{model_forward.1}
  #allocation0 [shape = 'u32[]', space=smem, size = 0x4, offset = 0x4, fixed_abs, tag = 'smem constant byte address 0x4 - core index']
  #allocation1 [shape = 'u32[144,128]{1,0:T(1,128)}', space=vmem, size = 0x12000, scoped, tag = 'internal scratch']
  %s0 = inlined_call_operand.vmem [shape: f32[8,10,8,384], index: 0, kind: input, shape index: {}]
  %s1 = inlined_call_operand.vmem [shape: f32[1152,64], index: 1, kind: input, shape index: {}]
  %s2 = inlined_call_operand.vmem [shape: f32[1,64], index: 2, kind: input, shape index: {}]
  %s3 = inlined_call_operand.vmem [shape: f32[64,32], index: 3, kind: input, shape index: {}]
  %s4 = inlined_call_operand.vmem [shape: f32[1,32], index: 4, kind: input, shape index: {}]
  %s5 = inlined_call_operand.vmem [shape: f32[8,64,32], index: 5, kind: output, shape index: {}]
  %s6 = sld [smem:[#allocation0]]
  $region53: #{model_forward.1} parent=0
    _
  %s8 = ssub.s32 1, %s6
  %s9 = scalar_select 0, %s8, %s6
  loop: start=0, step=1, limit=4
  $region2: #{model_forward.1} parent=0 // loop_pre_header
    _
  $region3: #{model_forward.1} parent=0 // loop_header
    %s11 = sphi 0, %s15
    %p12 = scmp.ge.s32.totalorder %s11, 4
    %s21 = sphi 0, %s23
    %s24 = sphi 0, %s21
    %s25 = sphi 0, %s24
    %s41 = sphi 0, %s25
    %s45 = sphi 0, %s45
    %s47 = sphi 0, %s45
    %s48 = sphi 0, %s47
    %s62 = sphi 0, %s48
    %s66 = sphi 0, %s66
    %s68 = sphi 0, %s66
    %s69 = sphi 0, %s68
    %s83 = sphi 0, %s69
    %s87 = sphi 0, %s87
    %s89 = sphi 0, %s87
    %s90 = sphi 0, %s89
    %s104 = sphi 0, %s90
    %s108 = sphi 0, %s108
    %s110 = sphi 0, %s108
    %s111 = sphi 0, %s110
    %s125 = sphi 0, %s111
    %s131 = sphi 0, %s133
    %s134 = sphi 0, %s131
    %s135 = sphi 0, %s134
    %s151 = sphi 0, %s135
  $region4: #{model_forward.1} parent=0 // loop_header_branch
    %14 = sbr.rel (%p12) target = $region8
  $region5: #{model_forward.1} parent=0 // loop_body
    %s16 = ssub.s32 %s11, 1
    %s17 = ssub.s32 %s11, 2
    %s18 = sadd.s32 %s11, 1
    %s19 = ssub.s32 %s11, %s18
    %p20 = scmp.eq.s32.totalorder %s19, 0
    %s22 = sadd.s32 %s21, 1
    %s23 = scalar_select %p20, %s21, %s22
    %p26 = pneg %p20
    %p27 = scmp.eq.s32.totalorder %s11, 1
    %p28 = por %p26, %p27
    %p29 = scmp.ne.s32.totalorder %s21, %s24
    %p30 = scmp.eq.s32.totalorder %s11, 0
    %p31 = por %p29, %p30
    %p32 = scmp.ne.s32.totalorder %s21, %s24
    %p33 = scmp.eq.s32.totalorder %s16, 1
    %p34 = por %p32, %p33
    %p35 = scmp.ne.s32.totalorder %s24, %s25
    %p36 = scmp.eq.s32.totalorder %s16, 0
    %p37 = por %p35, %p36
    %p38 = scmp.ne.s32.totalorder %s24, %s25
    %p39 = scmp.eq.s32.totalorder %s17, 1
    %p40 = por %p38, %p39
    %p42 = scmp.ne.s32.totalorder %s25, %s41
    %p43 = scmp.eq.s32.totalorder %s17, 0
    %p44 = por %p42, %p43
    %s46 = sadd.s32 %s45, 1
    %p49 = scmp.eq.s32.totalorder %s11, 1
    %p50 = scmp.ne.s32.totalorder %s45, %s47
    %p51 = scmp.eq.s32.totalorder %s11, 0
    %p52 = por %p50, %p51
    %p53 = scmp.ne.s32.totalorder %s45, %s47
    %p54 = scmp.eq.s32.totalorder %s16, 1
    %p55 = por %p53, %p54
    %p56 = scmp.ne.s32.totalorder %s47, %s48
    %p57 = scmp.eq.s32.totalorder %s16, 0
    %p58 = por %p56, %p57
    %p59 = scmp.ne.s32.totalorder %s47, %s48
    %p60 = scmp.eq.s32.totalorder %s17, 1
    %p61 = por %p59, %p60
    %p63 = scmp.ne.s32.totalorder %s48, %s62
    %p64 = scmp.eq.s32.totalorder %s17, 0
    %p65 = por %p63, %p64
    %s67 = sadd.s32 %s66, 1
    %p70 = scmp.eq.s32.totalorder %s11, 1
    %p71 = scmp.ne.s32.totalorder %s66, %s68
    %p72 = scmp.eq.s32.totalorder %s11, 0
    %p73 = por %p71, %p72
    %p74 = scmp.ne.s32.totalorder %s66, %s68
    %p75 = scmp.eq.s32.totalorder %s16, 1
    %p76 = por %p74, %p75
    %p77 = scmp.ne.s32.totalorder %s68, %s69
    %p78 = scmp.eq.s32.totalorder %s16, 0
    %p79 = por %p77, %p78
    %p80 = scmp.ne.s32.totalorder %s68, %s69
    %p81 = scmp.eq.s32.totalorder %s17, 1
    %p82 = por %p80, %p81
    %p84 = scmp.ne.s32.totalorder %s69, %s83
    %p85 = scmp.eq.s32.totalorder %s17, 0
    %p86 = por %p84, %p85
    %s88 = sadd.s32 %s87, 1
    %p91 = scmp.eq.s32.totalorder %s11, 1
    %p92 = scmp.ne.s32.totalorder %s87, %s89
    %p93 = scmp.eq.s32.totalorder %s11, 0
    %p94 = por %p92, %p93
    %p95 = scmp.ne.s32.totalorder %s87, %s89
    %p96 = scmp.eq.s32.totalorder %s16, 1
    %p97 = por %p95, %p96
    %p98 = scmp.ne.s32.totalorder %s89, %s90
    %p99 = scmp.eq.s32.totalorder %s16, 0
    %p100 = por %p98, %p99
    %p101 = scmp.ne.s32.totalorder %s89, %s90
    %p102 = scmp.eq.s32.totalorder %s17, 1
    %p103 = por %p101, %p102
    %p105 = scmp.ne.s32.totalorder %s90, %s104
    %p106 = scmp.eq.s32.totalorder %s17, 0
    %p107 = por %p105, %p106
    %s109 = sadd.s32 %s108, 1
    %p112 = scmp.eq.s32.totalorder %s11, 1
    %p113 = scmp.ne.s32.totalorder %s108, %s110
    %p114 = scmp.eq.s32.totalorder %s11, 0
    %p115 = por %p113, %p114
    %p116 = scmp.ne.s32.totalorder %s108, %s110
    %p117 = scmp.eq.s32.totalorder %s16, 1
    %p118 = por %p116, %p117
    %p119 = scmp.ne.s32.totalorder %s110, %s111
    %p120 = scmp.eq.s32.totalorder %s16, 0
    %p121 = por %p119, %p120
    %p122 = scmp.ne.s32.totalorder %s110, %s111
    %p123 = scmp.eq.s32.totalorder %s17, 1
    %p124 = por %p122, %p123
    %p126 = scmp.ne.s32.totalorder %s111, %s125
    %p127 = scmp.eq.s32.totalorder %s17, 0
    %p128 = por %p126, %p127
    %s129 = ssub.s32 %s11, %s18
    %p130 = scmp.eq.s32.totalorder %s129, 0
    %s132 = sadd.s32 %s131, 1
    %s133 = scalar_select %p130, %s131, %s132
    %p136 = pneg %p130
    %p137 = scmp.eq.s32.totalorder %s11, 1
    %p138 = por %p136, %p137
    %p139 = scmp.ne.s32.totalorder %s131, %s134
    %p140 = scmp.eq.s32.totalorder %s11, 0
    %p141 = por %p139, %p140
    %p142 = scmp.ne.s32.totalorder %s131, %s134
    %p143 = scmp.eq.s32.totalorder %s16, 1
    %p144 = por %p142, %p143
    %p145 = scmp.ne.s32.totalorder %s134, %s135
    %p146 = scmp.eq.s32.totalorder %s16, 0
    %p147 = por %p145, %p146
    %p148 = scmp.ne.s32.totalorder %s134, %s135
    %p149 = scmp.eq.s32.totalorder %s17, 1
    %p150 = por %p148, %p149
    %p152 = scmp.ne.s32.totalorder %s135, %s151
    %p153 = scmp.eq.s32.totalorder %s17, 0
    %p154 = por %p152, %p153
    %p155 = scmp.le.s32.totalorder 1, %s11
    %p156 = scmp.lt.s32.totalorder %s11, 3
    %p157 = pnand %p155, %p156
    %p158 = pneg %p157
    // Predicated region
    $region9: #{model_forward.1} parent=5 // pred_check
      _
    $region10: #{model_forward.1} parent=5 // pred_check_branch
      %160 = sbr.rel (%p157) target = $region12
    $region11: #{model_forward.1} parent=5 // pred_region
      %s161 = ssub.s32 %s11, 1
      // Predicated region
      $region13: #{model_forward.1} parent=11 // pred_check
        %p162 = pneg %p58
      $region14: #{model_forward.1} parent=11 // pred_check_branch
        %164 = sbr.rel (%p162) target = $region16
      $region15: #{model_forward.1} parent=11 // pred_region
        _
      $region16: #{model_forward.1} parent=11 // pred_fallthru
        _
      // Predicated region
      $region17: #{model_forward.1} parent=11 // pred_check
        %p165 = pneg %p79
      $region18: #{model_forward.1} parent=11 // pred_check_branch
        %167 = sbr.rel (%p165) target = $region20
      $region19: #{model_forward.1} parent=11 // pred_region
        _
      $region20: #{model_forward.1} parent=11 // pred_fallthru
        _
      // Predicated region
      $region21: #{model_forward.1} parent=11 // pred_check
        %p168 = pneg %p100
      $region22: #{model_forward.1} parent=11 // pred_check_branch
        %170 = sbr.rel (%p168) target = $region24
      $region23: #{model_forward.1} parent=11 // pred_region
        _
      $region24: #{model_forward.1} parent=11 // pred_fallthru
        _
      // Predicated region
      $region25: #{model_forward.1} parent=11 // pred_check
        %p171 = pneg %p121
      $region26: #{model_forward.1} parent=11 // pred_check_branch
        %173 = sbr.rel (%p171) target = $region28
      $region27: #{model_forward.1} parent=11 // pred_region
        _
      $region28: #{model_forward.1} parent=11 // pred_fallthru
        _
    $region12: #{model_forward.1} parent=5 // pred_fallthru
      _
    %p174 = scmp.lt.s32.totalorder %s11, 2
    // Predicated region
    $region29: #{model_forward.1} parent=5 // pred_check
      %p175 = pneg %p174
    $region30: #{model_forward.1} parent=5 // pred_check_branch
      %177 = sbr.rel (%p175) target = $region32
    $region31: #{model_forward.1} parent=5 // pred_region
      // Predicated region
      $region33: #{model_forward.1} parent=31 // pred_check
        %p178 = pneg %p31
      $region34: #{model_forward.1} parent=31 // pred_check_branch
        %180 = sbr.rel (%p178) target = $region36
      $region35: #{model_forward.1} parent=31 // pred_region
        %s181 = smul.u32 4, %s11
        %p182 = scmp.lt.s32.totalorder %s181, 7
        %s183 = scalar_select %p182, %s181, 7
        %s184 = smul.addr %s183, 30
        %s185 = smul.addr %s184, 8
        %s186 = scalar_lea.vmem %s0, %s185
        %s187 = smul.u32 4, %s11
      $region36: #{model_forward.1} parent=31 // pred_fallthru
        _
    $region32: #{model_forward.1} parent=5 // pred_fallthru
      _
    %p188 = scmp.le.s32.totalorder 1, %s11
    %p189 = scmp.lt.s32.totalorder %s11, 3
    %p190 = pnand %p188, %p189
    %p191 = pneg %p190
    // Predicated region
    $region37: #{model_forward.1} parent=5 // pred_check
      _
    $region38: #{model_forward.1} parent=5 // pred_check_branch
      %193 = sbr.rel (%p190) target = $region40
    $region39: #{model_forward.1} parent=5 // pred_region
      %s194 = ssub.s32 %s11, 1
      %s195 = smul.u32 4, %s16
      %p196 = scmp.lt.s32.totalorder %s195, 7
      %s197 = scalar_select %p196, %s195, 7
      %s198 = smul.addr %s197, 30
      %s199 = smul.addr %s198, 8
      %s200 = scalar_lea.vmem %s0, %s199
      %p201 = pneg %p37
      %p202 = pneg %p34
      %p203 = pneg %p58
      %p204 = pneg %p55
      %p205 = pneg %p79
      %p206 = pneg %p76
      %p207 = pneg %p100
      %p208 = pneg %p97
      %p209 = pneg %p121
      %p210 = pneg %p118
      %p211 = pneg %p147
      %p212 = pneg %p144
      %s213 = smul.u32 4, %s16
      %p214 = scmp.lt.s32.totalorder %s213, 7
      %s215 = scalar_select %p214, %s213, 7
      %s216 = smul.addr %s215, 8
      %s217 = smul.addr %s216, 8
      %s218 = scalar_lea.vmem %s5, %s217
      %s219 = smul.u32 4, %s16
      %p220 = scmp.lt.s32.totalorder %s219, 7
      %s221 = scalar_select %p220, %s219, 7
      %s222 = smul.addr %s221, 30
      %s223 = smul.addr %s222, 8
      %s224 = scalar_lea.vmem %s0, %s223
      %s225 = smul.u32 4, %s16
      %s226 = smul.u32 4, %s16
      %p227 = scmp.lt.s32.totalorder %s226, 7
      %s228 = scalar_select %p227, %s226, 7
      %s229 = smul.addr %s228, 8
      %s230 = smul.addr %s229, 8
      %s231 = scalar_lea.vmem %s5, %s230
      %s232 = smul.u32 4, %s16
      %v233 = vld [vmem:[%s224] sm:$0xff]
      %v234 = vld [vmem:[%s224 + $0x8] sm:$0xff]
      %v235 = vld [vmem:[%s224 + $0x10] sm:$0xff]
      %v236 = vld [vmem:[%s224 + $0x18] sm:$0xff]
      %v237 = vld [vmem:[%s224 + $0x20] sm:$0xff]
      %v238 = vld [vmem:[%s224 + $0x28] sm:$0xff]
      %v239 = vld [vmem:[%s224 + $0x30] sm:$0xff]
      %v240 = vld [vmem:[%s224 + $0x38] sm:$0xff]
      %v241 = vld [vmem:[%s224 + $0x40] sm:$0xff]
      %v242 = vld [vmem:[%s224 + $0x48] sm:$0xff]
      %v243 = vld [vmem:[%s224 + $0x50] sm:$0xff]
      %v244 = vld [vmem:[%s224 + $0x58] sm:$0xff]
      %v245 = vld [vmem:[%s224 + $0x60] sm:$0xff]
      %v246 = vld [vmem:[%s224 + $0x68] sm:$0xff]
      %v247 = vld [vmem:[%s224 + $0x70] sm:$0xff]
      %v248 = vld [vmem:[%s224 + $0x78] sm:$0xff]
      %v249 = vld [vmem:[%s224 + $0x80] sm:$0xff]
      %v250 = vld [vmem:[%s224 + $0x88] sm:$0xff]
      %v251 = vld [vmem:[%s224 + $0x90] sm:$0xff]
      %v252 = vld [vmem:[%s224 + $0x98] sm:$0xff]
      %v253 = vld [vmem:[%s224 + $0xa0] sm:$0xff]
      %v254 = vld [vmem:[%s224 + $0xa8] sm:$0xff]
      %v255 = vld [vmem:[%s224 + $0xb0] sm:$0xff]
      %v256 = vld [vmem:[%s224 + $0xb8] sm:$0xff]
      %v257 = vld [vmem:[%s224 + $0xf0] sm:$0xff]
      %v258 = vld [vmem:[%s224 + $0xf8] sm:$0xff]
      %v259 = vld [vmem:[%s224 + $0x100] sm:$0xff]
      %v260 = vld [vmem:[%s224 + $0x108] sm:$0xff]
      %v261 = vld [vmem:[%s224 + $0x110] sm:$0xff]
      %v262 = vld [vmem:[%s224 + $0x118] sm:$0xff]
      %v263 = vld [vmem:[%s224 + $0x120] sm:$0xff]
      %v264 = vld [vmem:[%s224 + $0x128] sm:$0xff]
      %v265 = vld [vmem:[%s224 + $0x130] sm:$0xff]
      %v266 = vld [vmem:[%s224 + $0x138] sm:$0xff]
      %v267 = vld [vmem:[%s224 + $0x140] sm:$0xff]
      %v268 = vld [vmem:[%s224 + $0x148] sm:$0xff]
      %v269 = vld [vmem:[%s224 + $0x150] sm:$0xff]
      %v270 = vld [vmem:[%s224 + $0x158] sm:$0xff]
      %v271 = vld [vmem:[%s224 + $0x160] sm:$0xff]
      %v272 = vld [vmem:[%s224 + $0x168] sm:$0xff]
      %v273 = vld [vmem:[%s224 + $0x170] sm:$0xff]
      %v274 = vld [vmem:[%s224 + $0x178] sm:$0xff]
      %v275 = vld [vmem:[%s224 + $0x180] sm:$0xff]
      %v276 = vld [vmem:[%s224 + $0x188] sm:$0xff]
      %v277 = vld [vmem:[%s224 + $0x190] sm:$0xff]
      %v278 = vld [vmem:[%s224 + $0x198] sm:$0xff]
      %v279 = vld [vmem:[%s224 + $0x1a0] sm:$0xff]
      %v280 = vld [vmem:[%s224 + $0x1a8] sm:$0xff]
      %v281 = vld [vmem:[%s224 + $0x1e0] sm:$0xff]
      %v282 = vld [vmem:[%s224 + $0x1e8] sm:$0xff]
      %v283 = vld [vmem:[%s224 + $0x1f0] sm:$0xff]
      %v284 = vld [vmem:[%s224 + $0x1f8] sm:$0xff]
      %v285 = vld [vmem:[%s224 + $0x200] sm:$0xff]
      %v286 = vld [vmem:[%s224 + $0x208] sm:$0xff]
      %v287 = vld [vmem:[%s224 + $0x210] sm:$0xff]
      %v288 = vld [vmem:[%s224 + $0x218] sm:$0xff]
      %v289 = vld [vmem:[%s224 + $0x220] sm:$0xff]
      %v290 = vld [vmem:[%s224 + $0x228] sm:$0xff]
      %v291 = vld [vmem:[%s224 + $0x230] sm:$0xff]
      %v292 = vld [vmem:[%s224 + $0x238] sm:$0xff]
      %v293 = vld [vmem:[%s224 + $0x240] sm:$0xff]
      %v294 = vld [vmem:[%s224 + $0x248] sm:$0xff]
      %v295 = vld [vmem:[%s224 + $0x250] sm:$0xff]
      %v296 = vld [vmem:[%s224 + $0x258] sm:$0xff]
      %v297 = vld [vmem:[%s224 + $0x260] sm:$0xff]
      %v298 = vld [vmem:[%s224 + $0x268] sm:$0xff]
      %v299 = vld [vmem:[%s224 + $0x270] sm:$0xff]
      %v300 = vld [vmem:[%s224 + $0x278] sm:$0xff]
      %v301 = vld [vmem:[%s224 + $0x280] sm:$0xff]
      %v302 = vld [vmem:[%s224 + $0x288] sm:$0xff]
      %v303 = vld [vmem:[%s224 + $0x290] sm:$0xff]
      %v304 = vld [vmem:[%s224 + $0x298] sm:$0xff]
      %v305 = vld [vmem:[%s224 + $0x2d0] sm:$0xff]
      %v306 = vld [vmem:[%s224 + $0x2d8] sm:$0xff]
      %v307 = vld [vmem:[%s224 + $0x2e0] sm:$0xff]
      %v308 = vld [vmem:[%s224 + $0x2e8] sm:$0xff]
      %v309 = vld [vmem:[%s224 + $0x2f0] sm:$0xff]
      %v310 = vld [vmem:[%s224 + $0x2f8] sm:$0xff]
      %v311 = vld [vmem:[%s224 + $0x300] sm:$0xff]
      %v312 = vld [vmem:[%s224 + $0x308] sm:$0xff]
      %v313 = vld [vmem:[%s224 + $0x310] sm:$0xff]
      %v314 = vld [vmem:[%s224 + $0x318] sm:$0xff]
      %v315 = vld [vmem:[%s224 + $0x320] sm:$0xff]
      %v316 = vld [vmem:[%s224 + $0x328] sm:$0xff]
      %v317 = vld [vmem:[%s224 + $0x330] sm:$0xff]
      %v318 = vld [vmem:[%s224 + $0x338] sm:$0xff]
      %v319 = vld [vmem:[%s224 + $0x340] sm:$0xff]
      %v320 = vld [vmem:[%s224 + $0x348] sm:$0xff]
      %v321 = vld [vmem:[%s224 + $0x350] sm:$0xff]
      %v322 = vld [vmem:[%s224 + $0x358] sm:$0xff]
      %v323 = vld [vmem:[%s224 + $0x360] sm:$0xff]
      %v324 = vld [vmem:[%s224 + $0x368] sm:$0xff]
      %v325 = vld [vmem:[%s224 + $0x370] sm:$0xff]
      %v326 = vld [vmem:[%s224 + $0x378] sm:$0xff]
      %v327 = vld [vmem:[%s224 + $0x380] sm:$0xff]
      %v328 = vld [vmem:[%s224 + $0x388] sm:$0xff]
      %s329 = scalar_lea.vmem %s224, 24
      %v330 = vld [vmem:[%s329] sm:$0xff]
      %v331 = vld [vmem:[%s329 + $0x8] sm:$0xff]
      %v332 = vld [vmem:[%s329 + $0x10] sm:$0xff]
      %v333 = vld [vmem:[%s329 + $0x18] sm:$0xff]
      %v334 = vld [vmem:[%s329 + $0x20] sm:$0xff]
      %v335 = vld [vmem:[%s329 + $0x28] sm:$0xff]
      %v336 = vld [vmem:[%s329 + $0x30] sm:$0xff]
      %v337 = vld [vmem:[%s329 + $0x38] sm:$0xff]
      %v338 = vld [vmem:[%s329 + $0x40] sm:$0xff]
      %v339 = vld [vmem:[%s329 + $0x48] sm:$0xff]
      %v340 = vld [vmem:[%s329 + $0x50] sm:$0xff]
      %v341 = vld [vmem:[%s329 + $0x58] sm:$0xff]
      %v342 = vld [vmem:[%s329 + $0x60] sm:$0xff]
      %v343 = vld [vmem:[%s329 + $0x68] sm:$0xff]
      %v344 = vld [vmem:[%s329 + $0x70] sm:$0xff]
      %v345 = vld [vmem:[%s329 + $0x78] sm:$0xff]
      %v346 = vld [vmem:[%s329 + $0x80] sm:$0xff]
      %v347 = vld [vmem:[%s329 + $0x88] sm:$0xff]
      %v348 = vld [vmem:[%s329 + $0x90] sm:$0xff]
      %v349 = vld [vmem:[%s329 + $0x98] sm:$0xff]
      %v350 = vld [vmem:[%s329 + $0xa0] sm:$0xff]
      %v351 = vld [vmem:[%s329 + $0xa8] sm:$0xff]
      %v352 = vld [vmem:[%s329 + $0xb0] sm:$0xff]
      %v353 = vld [vmem:[%s329 + $0xb8] sm:$0xff]
      %v354 = vld [vmem:[%s329 + $0xf0] sm:$0xff]
      %v355 = vld [vmem:[%s329 + $0xf8] sm:$0xff]
      %v356 = vld [vmem:[%s329 + $0x100] sm:$0xff]
      %v357 = vld [vmem:[%s329 + $0x108] sm:$0xff]
      %v358 = vld [vmem:[%s329 + $0x110] sm:$0xff]
      %v359 = vld [vmem:[%s329 + $0x118] sm:$0xff]
      %v360 = vld [vmem:[%s329 + $0x120] sm:$0xff]
      %v361 = vld [vmem:[%s329 + $0x128] sm:$0xff]
      %v362 = vld [vmem:[%s329 + $0x130] sm:$0xff]
      %v363 = vld [vmem:[%s329 + $0x138] sm:$0xff]
      %v364 = vld [vmem:[%s329 + $0x140] sm:$0xff]
      %v365 = vld [vmem:[%s329 + $0x148] sm:$0xff]
      %v366 = vld [vmem:[%s329 + $0x150] sm:$0xff]
      %v367 = vld [vmem:[%s329 + $0x158] sm:$0xff]
      %v368 = vld [vmem:[%s329 + $0x160] sm:$0xff]
      %v369 = vld [vmem:[%s329 + $0x168] sm:$0xff]
      %v370 = vld [vmem:[%s329 + $0x170] sm:$0xff]
      %v371 = vld [vmem:[%s329 + $0x178] sm:$0xff]
      %v372 = vld [vmem:[%s329 + $0x180] sm:$0xff]
      %v373 = vld [vmem:[%s329 + $0x188] sm:$0xff]
      %v374 = vld [vmem:[%s329 + $0x190] sm:$0xff]
      %v375 = vld [vmem:[%s329 + $0x198] sm:$0xff]
      %v376 = vld [vmem:[%s329 + $0x1a0] sm:$0xff]
      %v377 = vld [vmem:[%s329 + $0x1a8] sm:$0xff]
      %v378 = vld [vmem:[%s329 + $0x1e0] sm:$0xff]
      %v379 = vld [vmem:[%s329 + $0x1e8] sm:$0xff]
      %v380 = vld [vmem:[%s329 + $0x1f0] sm:$0xff]
      %v381 = vld [vmem:[%s329 + $0x1f8] sm:$0xff]
      %v382 = vld [vmem:[%s329 + $0x200] sm:$0xff]
      %v383 = vld [vmem:[%s329 + $0x208] sm:$0xff]
      %v384 = vld [vmem:[%s329 + $0x210] sm:$0xff]
      %v385 = vld [vmem:[%s329 + $0x218] sm:$0xff]
      %v386 = vld [vmem:[%s329 + $0x220] sm:$0xff]
      %v387 = vld [vmem:[%s329 + $0x228] sm:$0xff]
      %v388 = vld [vmem:[%s329 + $0x230] sm:$0xff]
      %v389 = vld [vmem:[%s329 + $0x238] sm:$0xff]
      %v390 = vld [vmem:[%s329 + $0x240] sm:$0xff]
      %v391 = vld [vmem:[%s329 + $0x248] sm:$0xff]
      %v392 = vld [vmem:[%s329 + $0x250] sm:$0xff]
      %v393 = vld [vmem:[%s329 + $0x258] sm:$0xff]
      %v394 = vld [vmem:[%s329 + $0x260] sm:$0xff]
      %v395 = vld [vmem:[%s329 + $0x268] sm:$0xff]
      %v396 = vld [vmem:[%s329 + $0x270] sm:$0xff]
      %v397 = vld [vmem:[%s329 + $0x278] sm:$0xff]
      %v398 = vld [vmem:[%s329 + $0x280] sm:$0xff]
      %v399 = vld [vmem:[%s329 + $0x288] sm:$0xff]
      %v400 = vld [vmem:[%s329 + $0x290] sm:$0xff]
      %v401 = vld [vmem:[%s329 + $0x298] sm:$0xff]
      %v402 = vld [vmem:[%s329 + $0x2d0] sm:$0xff]
      %v403 = vld [vmem:[%s329 + $0x2d8] sm:$0xff]
      %v404 = vld [vmem:[%s329 + $0x2e0] sm:$0xff]
      %v405 = vld [vmem:[%s329 + $0x2e8] sm:$0xff]
      %v406 = vld [vmem:[%s329 + $0x2f0] sm:$0xff]
      %v407 = vld [vmem:[%s329 + $0x2f8] sm:$0xff]
      %v408 = vld [vmem:[%s329 + $0x300] sm:$0xff]
      %v409 = vld [vmem:[%s329 + $0x308] sm:$0xff]
      %v410 = vld [vmem:[%s329 + $0x310] sm:$0xff]
      %v411 = vld [vmem:[%s329 + $0x318] sm:$0xff]
      %v412 = vld [vmem:[%s329 + $0x320] sm:$0xff]
      %v413 = vld [vmem:[%s329 + $0x328] sm:$0xff]
      %v414 = vld [vmem:[%s329 + $0x330] sm:$0xff]
      %v415 = vld [vmem:[%s329 + $0x338] sm:$0xff]
      %v416 = vld [vmem:[%s329 + $0x340] sm:$0xff]
      %v417 = vld [vmem:[%s329 + $0x348] sm:$0xff]
      %v418 = vld [vmem:[%s329 + $0x350] sm:$0xff]
      %v419 = vld [vmem:[%s329 + $0x358] sm:$0xff]
      %v420 = vld [vmem:[%s329 + $0x360] sm:$0xff]
      %v421 = vld [vmem:[%s329 + $0x368] sm:$0xff]
      %v422 = vld [vmem:[%s329 + $0x370] sm:$0xff]
      %v423 = vld [vmem:[%s329 + $0x378] sm:$0xff]
      %v424 = vld [vmem:[%s329 + $0x380] sm:$0xff]
      %v425 = vld [vmem:[%s329 + $0x388] sm:$0xff]
      %s426 = scalar_lea.vmem %s224, 48
      %v427 = vld [vmem:[%s426] sm:$0xff]
      %v428 = vld [vmem:[%s426 + $0x8] sm:$0xff]
      %v429 = vld [vmem:[%s426 + $0x10] sm:$0xff]
      %v430 = vld [vmem:[%s426 + $0x18] sm:$0xff]
      %v431 = vld [vmem:[%s426 + $0x20] sm:$0xff]
      %v432 = vld [vmem:[%s426 + $0x28] sm:$0xff]
      %v433 = vld [vmem:[%s426 + $0x30] sm:$0xff]
      %v434 = vld [vmem:[%s426 + $0x38] sm:$0xff]
      %v435 = vld [vmem:[%s426 + $0x40] sm:$0xff]
      %v436 = vld [vmem:[%s426 + $0x48] sm:$0xff]
      %v437 = vld [vmem:[%s426 + $0x50] sm:$0xff]
      %v438 = vld [vmem:[%s426 + $0x58] sm:$0xff]
      %v439 = vld [vmem:[%s426 + $0x60] sm:$0xff]
      %v440 = vld [vmem:[%s426 + $0x68] sm:$0xff]
      %v441 = vld [vmem:[%s426 + $0x70] sm:$0xff]
      %v442 = vld [vmem:[%s426 + $0x78] sm:$0xff]
      %v443 = vld [vmem:[%s426 + $0x80] sm:$0xff]
      %v444 = vld [vmem:[%s426 + $0x88] sm:$0xff]
      %v445 = vld [vmem:[%s426 + $0x90] sm:$0xff]
      %v446 = vld [vmem:[%s426 + $0x98] sm:$0xff]
      %v447 = vld [vmem:[%s426 + $0xa0] sm:$0xff]
      %v448 = vld [vmem:[%s426 + $0xa8] sm:$0xff]
      %v449 = vld [vmem:[%s426 + $0xb0] sm:$0xff]
      %v450 = vld [vmem:[%s426 + $0xb8] sm:$0xff]
      %v451 = vld [vmem:[%s426 + $0xf0] sm:$0xff]
      %v452 = vld [vmem:[%s426 + $0xf8] sm:$0xff]
      %v453 = vld [vmem:[%s426 + $0x100] sm:$0xff]
      %v454 = vld [vmem:[%s426 + $0x108] sm:$0xff]
      %v455 = vld [vmem:[%s426 + $0x110] sm:$0xff]
      %v456 = vld [vmem:[%s426 + $0x118] sm:$0xff]
      %v457 = vld [vmem:[%s426 + $0x120] sm:$0xff]
      %v458 = vld [vmem:[%s426 + $0x128] sm:$0xff]
      %v459 = vld [vmem:[%s426 + $0x130] sm:$0xff]
      %v460 = vld [vmem:[%s426 + $0x138] sm:$0xff]
      %v461 = vld [vmem:[%s426 + $0x140] sm:$0xff]
      %v462 = vld [vmem:[%s426 + $0x148] sm:$0xff]
      %v463 = vld [vmem:[%s426 + $0x150] sm:$0xff]
      %v464 = vld [vmem:[%s426 + $0x158] sm:$0xff]
      %v465 = vld [vmem:[%s426 + $0x160] sm:$0xff]
      %v466 = vld [vmem:[%s426 + $0x168] sm:$0xff]
      %v467 = vld [vmem:[%s426 + $0x170] sm:$0xff]
      %v468 = vld [vmem:[%s426 + $0x178] sm:$0xff]
      %v469 = vld [vmem:[%s426 + $0x180] sm:$0xff]
      %v470 = vld [vmem:[%s426 + $0x188] sm:$0xff]
      %v471 = vld [vmem:[%s426 + $0x190] sm:$0xff]
      %v472 = vld [vmem:[%s426 + $0x198] sm:$0xff]
      %v473 = vld [vmem:[%s426 + $0x1a0] sm:$0xff]
      %v474 = vld [vmem:[%s426 + $0x1a8] sm:$0xff]
      %v475 = vld [vmem:[%s426 + $0x1e0] sm:$0xff]
      %v476 = vld [vmem:[%s426 + $0x1e8] sm:$0xff]
      %v477 = vld [vmem:[%s426 + $0x1f0] sm:$0xff]
      %v478 = vld [vmem:[%s426 + $0x1f8] sm:$0xff]
      %v479 = vld [vmem:[%s426 + $0x200] sm:$0xff]
      %v480 = vld [vmem:[%s426 + $0x208] sm:$0xff]
      %v481 = vld [vmem:[%s426 + $0x210] sm:$0xff]
      %v482 = vld [vmem:[%s426 + $0x218] sm:$0xff]
      %v483 = vld [vmem:[%s426 + $0x220] sm:$0xff]
      %v484 = vld [vmem:[%s426 + $0x228] sm:$0xff]
      %v485 = vld [vmem:[%s426 + $0x230] sm:$0xff]
      %v486 = vld [vmem:[%s426 + $0x238] sm:$0xff]
      %v487 = vld [vmem:[%s426 + $0x240] sm:$0xff]
      %v488 = vld [vmem:[%s426 + $0x248] sm:$0xff]
      %v489 = vld [vmem:[%s426 + $0x250] sm:$0xff]
      %v490 = vld [vmem:[%s426 + $0x258] sm:$0xff]
      %v491 = vld [vmem:[%s426 + $0x260] sm:$0xff]
      %v492 = vld [vmem:[%s426 + $0x268] sm:$0xff]
      %v493 = vld [vmem:[%s426 + $0x270] sm:$0xff]
      %v494 = vld [vmem:[%s426 + $0x278] sm:$0xff]
      %v495 = vld [vmem:[%s426 + $0x280] sm:$0xff]
      %v496 = vld [vmem:[%s426 + $0x288] sm:$0xff]
      %v497 = vld [vmem:[%s426 + $0x290] sm:$0xff]
      %v498 = vld [vmem:[%s426 + $0x298] sm:$0xff]
      %v499 = vld [vmem:[%s426 + $0x2d0] sm:$0xff]
      %v500 = vld [vmem:[%s426 + $0x2d8] sm:$0xff]
      %v501 = vld [vmem:[%s426 + $0x2e0] sm:$0xff]
      %v502 = vld [vmem:[%s426 + $0x2e8] sm:$0xff]
      %v503 = vld [vmem:[%s426 + $0x2f0] sm:$0xff]
      %v504 = vld [vmem:[%s426 + $0x2f8] sm:$0xff]
      %v505 = vld [vmem:[%s426 + $0x300] sm:$0xff]
      %v506 = vld [vmem:[%s426 + $0x308] sm:$0xff]
      %v507 = vld [vmem:[%s426 + $0x310] sm:$0xff]
      %v508 = vld [vmem:[%s426 + $0x318] sm:$0xff]
      %v509 = vld [vmem:[%s426 + $0x320] sm:$0xff]
      %v510 = vld [vmem:[%s426 + $0x328] sm:$0xff]
      %v511 = vld [vmem:[%s426 + $0x330] sm:$0xff]
      %v512 = vld [vmem:[%s426 + $0x338] sm:$0xff]
      %v513 = vld [vmem:[%s426 + $0x340] sm:$0xff]
      %v514 = vld [vmem:[%s426 + $0x348] sm:$0xff]
      %v515 = vld [vmem:[%s426 + $0x350] sm:$0xff]
      %v516 = vld [vmem:[%s426 + $0x358] sm:$0xff]
      %v517 = vld [vmem:[%s426 + $0x360] sm:$0xff]
      %v518 = vld [vmem:[%s426 + $0x368] sm:$0xff]
      %v519 = vld [vmem:[%s426 + $0x370] sm:$0xff]
      %v520 = vld [vmem:[%s426 + $0x378] sm:$0xff]
      %v521 = vld [vmem:[%s426 + $0x380] sm:$0xff]
      %v522 = vld [vmem:[%s426 + $0x388] sm:$0xff]
      %v523 = vld [vmem:[%s1] sm:$0xff]
      %v524 = vld [vmem:[%s1 + $0x8] sm:$0xff]
      %v525 = vld [vmem:[%s1 + $0x10] sm:$0xff]
      %v526 = vld [vmem:[%s1 + $0x18] sm:$0xff]
      %v527 = vld [vmem:[%s1 + $0x20] sm:$0xff]
      %v528 = vld [vmem:[%s1 + $0x28] sm:$0xff]
      %v529 = vld [vmem:[%s1 + $0x30] sm:$0xff]
      %v530 = vld [vmem:[%s1 + $0x38] sm:$0xff]
      %v531 = vld [vmem:[%s1 + $0x40] sm:$0xff]
      %v532 = vld [vmem:[%s1 + $0x48] sm:$0xff]
      %v533 = vld [vmem:[%s1 + $0x50] sm:$0xff]
      %v534 = vld [vmem:[%s1 + $0x58] sm:$0xff]
      %v535 = vld [vmem:[%s1 + $0x60] sm:$0xff]
      %v536 = vld [vmem:[%s1 + $0x68] sm:$0xff]
      %v537 = vld [vmem:[%s1 + $0x70] sm:$0xff]
      %v538 = vld [vmem:[%s1 + $0x78] sm:$0xff]
      %v539 = vld [vmem:[%s1 + $0x80] sm:$0xff]
      %v540 = vld [vmem:[%s1 + $0x88] sm:$0xff]
      %v541 = vld [vmem:[%s1 + $0x90] sm:$0xff]
      %v542 = vld [vmem:[%s1 + $0x98] sm:$0xff]
      %v543 = vld [vmem:[%s1 + $0xa0] sm:$0xff]
      %v544 = vld [vmem:[%s1 + $0xa8] sm:$0xff]
      %v545 = vld [vmem:[%s1 + $0xb0] sm:$0xff]
      %v546 = vld [vmem:[%s1 + $0xb8] sm:$0xff]
      %v547 = vld [vmem:[%s1 + $0xc0] sm:$0xff]
      %v548 = vld [vmem:[%s1 + $0xc8] sm:$0xff]
      %v549 = vld [vmem:[%s1 + $0xd0] sm:$0xff]
      %v550 = vld [vmem:[%s1 + $0xd8] sm:$0xff]
      %v551 = vld [vmem:[%s1 + $0xe0] sm:$0xff]
      %v552 = vld [vmem:[%s1 + $0xe8] sm:$0xff]
      %v553 = vld [vmem:[%s1 + $0xf0] sm:$0xff]
      %v554 = vld [vmem:[%s1 + $0xf8] sm:$0xff]
      %v555 = vld [vmem:[%s1 + $0x100] sm:$0xff]
      %v556 = vld [vmem:[%s1 + $0x108] sm:$0xff]
      %v557 = vld [vmem:[%s1 + $0x110] sm:$0xff]
      %v558 = vld [vmem:[%s1 + $0x118] sm:$0xff]
      %v559 = vld [vmem:[%s1 + $0x120] sm:$0xff]
      %v560 = vld [vmem:[%s1 + $0x128] sm:$0xff]
      %v561 = vld [vmem:[%s1 + $0x130] sm:$0xff]
      %v562 = vld [vmem:[%s1 + $0x138] sm:$0xff]
      %v563 = vld [vmem:[%s1 + $0x140] sm:$0xff]
      %v564 = vld [vmem:[%s1 + $0x148] sm:$0xff]
      %v565 = vld [vmem:[%s1 + $0x150] sm:$0xff]
      %v566 = vld [vmem:[%s1 + $0x158] sm:$0xff]
      %v567 = vld [vmem:[%s1 + $0x160] sm:$0xff]
      %v568 = vld [vmem:[%s1 + $0x168] sm:$0xff]
      %v569 = vld [vmem:[%s1 + $0x170] sm:$0xff]
      %v570 = vld [vmem:[%s1 + $0x178] sm:$0xff]
      %v571 = vld [vmem:[%s1 + $0x180] sm:$0xff]
      %v572 = vld [vmem:[%s1 + $0x188] sm:$0xff]
      %v573 = vld [vmem:[%s1 + $0x190] sm:$0xff]
      %v574 = vld [vmem:[%s1 + $0x198] sm:$0xff]
      %v575 = vld [vmem:[%s1 + $0x1a0] sm:$0xff]
      %v576 = vld [vmem:[%s1 + $0x1a8] sm:$0xff]
      %v577 = vld [vmem:[%s1 + $0x1b0] sm:$0xff]
      %v578 = vld [vmem:[%s1 + $0x1b8] sm:$0xff]
      %v579 = vld [vmem:[%s1 + $0x1c0] sm:$0xff]
      %v580 = vld [vmem:[%s1 + $0x1c8] sm:$0xff]
      %v581 = vld [vmem:[%s1 + $0x1d0] sm:$0xff]
      %v582 = vld [vmem:[%s1 + $0x1d8] sm:$0xff]
      %v583 = vld [vmem:[%s1 + $0x1e0] sm:$0xff]
      %v584 = vld [vmem:[%s1 + $0x1e8] sm:$0xff]
      %v585 = vld [vmem:[%s1 + $0x1f0] sm:$0xff]
      %v586 = vld [vmem:[%s1 + $0x1f8] sm:$0xff]
      %v587 = vld [vmem:[%s1 + $0x200] sm:$0xff]
      %v588 = vld [vmem:[%s1 + $0x208] sm:$0xff]
      %v589 = vld [vmem:[%s1 + $0x210] sm:$0xff]
      %v590 = vld [vmem:[%s1 + $0x218] sm:$0xff]
      %v591 = vld [vmem:[%s1 + $0x220] sm:$0xff]
      %v592 = vld [vmem:[%s1 + $0x228] sm:$0xff]
      %v593 = vld [vmem:[%s1 + $0x230] sm:$0xff]
      %v594 = vld [vmem:[%s1 + $0x238] sm:$0xff]
      %v595 = vld [vmem:[%s1 + $0x240] sm:$0xff]
      %v596 = vld [vmem:[%s1 + $0x248] sm:$0xff]
      %v597 = vld [vmem:[%s1 + $0x250] sm:$0xff]
      %v598 = vld [vmem:[%s1 + $0x258] sm:$0xff]
      %v599 = vld [vmem:[%s1 + $0x260] sm:$0xff]
      %v600 = vld [vmem:[%s1 + $0x268] sm:$0xff]
      %v601 = vld [vmem:[%s1 + $0x270] sm:$0xff]
      %v602 = vld [vmem:[%s1 + $0x278] sm:$0xff]
      %v603 = vld [vmem:[%s1 + $0x280] sm:$0xff]
      %v604 = vld [vmem:[%s1 + $0x288] sm:$0xff]
      %v605 = vld [vmem:[%s1 + $0x290] sm:$0xff]
      %v606 = vld [vmem:[%s1 + $0x298] sm:$0xff]
      %v607 = vld [vmem:[%s1 + $0x2a0] sm:$0xff]
      %v608 = vld [vmem:[%s1 + $0x2a8] sm:$0xff]
      %v609 = vld [vmem:[%s1 + $0x2b0] sm:$0xff]
      %v610 = vld [vmem:[%s1 + $0x2b8] sm:$0xff]
      %v611 = vld [vmem:[%s1 + $0x2c0] sm:$0xff]
      %v612 = vld [vmem:[%s1 + $0x2c8] sm:$0xff]
      %v613 = vld [vmem:[%s1 + $0x2d0] sm:$0xff]
      %v614 = vld [vmem:[%s1 + $0x2d8] sm:$0xff]
      %v615 = vld [vmem:[%s1 + $0x2e0] sm:$0xff]
      %v616 = vld [vmem:[%s1 + $0x2e8] sm:$0xff]
      %v617 = vld [vmem:[%s1 + $0x2f0] sm:$0xff]
      %v618 = vld [vmem:[%s1 + $0x2f8] sm:$0xff]
      %v619 = vld [vmem:[%s1 + $0x300] sm:$0xff]
      %v620 = vld [vmem:[%s1 + $0x308] sm:$0xff]
      %v621 = vld [vmem:[%s1 + $0x310] sm:$0xff]
      %v622 = vld [vmem:[%s1 + $0x318] sm:$0xff]
      %v623 = vld [vmem:[%s1 + $0x320] sm:$0xff]
      %v624 = vld [vmem:[%s1 + $0x328] sm:$0xff]
      %v625 = vld [vmem:[%s1 + $0x330] sm:$0xff]
      %v626 = vld [vmem:[%s1 + $0x338] sm:$0xff]
      %v627 = vld [vmem:[%s1 + $0x340] sm:$0xff]
      %v628 = vld [vmem:[%s1 + $0x348] sm:$0xff]
      %v629 = vld [vmem:[%s1 + $0x350] sm:$0xff]
      %v630 = vld [vmem:[%s1 + $0x358] sm:$0xff]
      %v631 = vld [vmem:[%s1 + $0x360] sm:$0xff]
      %v632 = vld [vmem:[%s1 + $0x368] sm:$0xff]
      %v633 = vld [vmem:[%s1 + $0x370] sm:$0xff]
      %v634 = vld [vmem:[%s1 + $0x378] sm:$0xff]
      %v635 = vld [vmem:[%s1 + $0x380] sm:$0xff]
      %v636 = vld [vmem:[%s1 + $0x388] sm:$0xff]
      %v637 = vld [vmem:[%s1 + $0x390] sm:$0xff]
      %v638 = vld [vmem:[%s1 + $0x398] sm:$0xff]
      %v639 = vld [vmem:[%s1 + $0x3a0] sm:$0xff]
      %v640 = vld [vmem:[%s1 + $0x3a8] sm:$0xff]
      %v641 = vld [vmem:[%s1 + $0x3b0] sm:$0xff]
      %v642 = vld [vmem:[%s1 + $0x3b8] sm:$0xff]
      %v643 = vld [vmem:[%s1 + $0x3c0] sm:$0xff]
      %v644 = vld [vmem:[%s1 + $0x3c8] sm:$0xff]
      %v645 = vld [vmem:[%s1 + $0x3d0] sm:$0xff]
      %v646 = vld [vmem:[%s1 + $0x3d8] sm:$0xff]
      %v647 = vld [vmem:[%s1 + $0x3e0] sm:$0xff]
      %v648 = vld [vmem:[%s1 + $0x3e8] sm:$0xff]
      %v649 = vld [vmem:[%s1 + $0x3f0] sm:$0xff]
      %v650 = vld [vmem:[%s1 + $0x3f8] sm:$0xff]
      %v651 = vld [vmem:[%s1 + $0x400] sm:$0xff]
      %v652 = vld [vmem:[%s1 + $0x408] sm:$0xff]
      %v653 = vld [vmem:[%s1 + $0x410] sm:$0xff]
      %v654 = vld [vmem:[%s1 + $0x418] sm:$0xff]
      %v655 = vld [vmem:[%s1 + $0x420] sm:$0xff]
      %v656 = vld [vmem:[%s1 + $0x428] sm:$0xff]
      %v657 = vld [vmem:[%s1 + $0x430] sm:$0xff]
      %v658 = vld [vmem:[%s1 + $0x438] sm:$0xff]
      %v659 = vld [vmem:[%s1 + $0x440] sm:$0xff]
      %v660 = vld [vmem:[%s1 + $0x448] sm:$0xff]
      %v661 = vld [vmem:[%s1 + $0x450] sm:$0xff]
      %v662 = vld [vmem:[%s1 + $0x458] sm:$0xff]
      %v663 = vld [vmem:[%s1 + $0x460] sm:$0xff]
      %v664 = vld [vmem:[%s1 + $0x468] sm:$0xff]
      %v665 = vld [vmem:[%s1 + $0x470] sm:$0xff]
      %v666 = vld [vmem:[%s1 + $0x478] sm:$0xff]
      %v667 = vld [vmem:[%s2] sm:$0x1]
      %v669 = vlaneseq
      %v670 = vshrl.u32 %v669, 7
      %v671 = vsub.s32 0, %v670
      %v672 = vrot.slane %v667, %v671
      %674 = vmatprep.subr.mxu0 0.0
      %675 = vmatpush1.msra.mxu0 %v523
      %676 = vmatprep.subr.mxu0 0.0
      %677 = vmatpush1.msra.mxu0 %v524
      %678 = vmatprep.subr.mxu0 0.0
      %679 = vmatpush1.msra.mxu0 %v525
      %680 = vmatprep.subr.mxu0 0.0
      %681 = vmatpush1.msra.mxu0 %v526
      %682 = vmatprep.subr.mxu0 0.0
      %683 = vmatpush1.msra.mxu0 %v527
      %684 = vmatprep.subr.mxu0 0.0
      %685 = vmatpush1.msra.mxu0 %v528
      %686 = vmatprep.subr.mxu0 0.0
      %687 = vmatpush1.msra.mxu0 %v529
      %688 = vmatprep.subr.mxu0 0.0
      %689 = vmatpush1.msra.mxu0 %v530
      %690 = vmatprep.subr.mxu0 0.0
      %691 = vmatpush1.msra.mxu0 %v531
      %692 = vmatprep.subr.mxu0 0.0
      %693 = vmatpush1.msra.mxu0 %v532
      %694 = vmatprep.subr.mxu0 0.0
      %695 = vmatpush1.msra.mxu0 %v533
      %696 = vmatprep.subr.mxu0 0.0
      %697 = vmatpush1.msra.mxu0 %v534
      %698 = vmatprep.subr.mxu0 0.0
      %699 = vmatpush1.msra.mxu0 %v535
      %700 = vmatprep.subr.mxu0 0.0
      %701 = vmatpush1.msra.mxu0 %v536
      %702 = vmatprep.subr.mxu0 0.0
      %703 = vmatpush1.msra.mxu0 %v537
      %704 = vmatprep.subr.mxu0 0.0
      %705 = vmatpush1.msra.mxu0 %v538
      %706 = vmatprep.subr.mxu0 0.0
      %707 = vmatpush1.msra.mxu0 %v539
      %708 = vmatprep.subr.mxu0 0.0
      %709 = vmatpush1.msra.mxu0 %v540
      %710 = vmatprep.subr.mxu0 0.0
      %711 = vmatpush1.msra.mxu0 %v541
      %712 = vmatprep.subr.mxu0 0.0
      %713 = vmatpush1.msra.mxu0 %v542
      %714 = vmatprep.subr.mxu0 0.0
      %715 = vmatpush1.msra.mxu0 %v543
      %716 = vmatprep.subr.mxu0 0.0
      %717 = vmatpush1.msra.mxu0 %v544
      %718 = vmatprep.subr.mxu0 0.0
      %719 = vmatpush1.msra.mxu0 %v545
      %720 = vmatprep.subr.mxu0 0.0
      %721 = vmatpush1.msra.mxu0 %v546
      %722 = vmatprep.subr.mxu0 0.0
      %723 = vmatpush1.msra.mxu0 %v547
      %724 = vmatprep.subr.mxu0 0.0
      %725 = vmatpush1.msra.mxu0 %v548
      %726 = vmatprep.subr.mxu0 0.0
      %727 = vmatpush1.msra.mxu0 %v549
      %728 = vmatprep.subr.mxu0 0.0
      %729 = vmatpush1.msra.mxu0 %v550
      %730 = vmatprep.subr.mxu0 0.0
      %731 = vmatpush1.msra.mxu0 %v551
      %732 = vmatprep.subr.mxu0 0.0
      %733 = vmatpush1.msra.mxu0 %v552
      %734 = vmatprep.subr.mxu0 0.0
      %735 = vmatpush1.msra.mxu0 %v553
      %736 = vmatprep.subr.mxu0 0.0
      %737 = vmatpush1.msra.mxu0 %v554
      %738 = vmatprep.mubr.f32.mxu0 %v234
      %739 = vmatmul.mubr.f32.gmra.mrb[0].mxu0 %v233
      %v740 = vpop.f32.mrb[0].mxu0
      %v741 = vadd.f32 %v672, %v740
      %v742 = vpop.f32.mrb[0].mxu0
      %743 = vmatprep.mubr.f32.mxu0 %v237
      %744 = vmatmul.mubr.f32.gmra.mrb[0].mxu0 %v236
      %v745 = vpop.f32.mrb[0].mxu0
      %v746 = vadd.f32 %v672, %v745
      %v747 = vpop.f32.mrb[0].mxu0
      %748 = vmatprep.mubr.f32.mxu0 %v240
      %749 = vmatmul.mubr.f32.gmra.mrb[0].mxu0 %v239
      %v750 = vpop.f32.mrb[0].mxu0
      %v751 = vadd.f32 %v672, %v750
      %v752 = vpop.f32.mrb[0].mxu0
      %753 = vmatprep.mubr.f32.mxu0 %v243
      %754 = vmatmul.mubr.f32.gmra.mrb[0].mxu0 %v242
      %v755 = vpop.f32.mrb[0].mxu0
      %v756 = vadd.f32 %v672, %v755
      %v757 = vpop.f32.mrb[0].mxu0
      %758 = vmatprep.mubr.f32.mxu0 %v246
      %759 = vmatmul.mubr.f32.gmra.mrb[0].mxu0 %v245
      %v760 = vpop.f32.mrb[0].mxu0
      %v761 = vadd.f32 %v672, %v760
      %v762 = vpop.f32.mrb[0].mxu0
      %763 = vmatprep.mubr.f32.mxu0 %v249
      %764 = vmatmul.mubr.f32.gmra.mrb[0].mxu0 %v248
      %v765 = vpop.f32.mrb[0].mxu0
      %v766 = vadd.f32 %v672, %v765
      %v767 = vpop.f32.mrb[0].mxu0
      %768 = vmatprep.mubr.f32.mxu0 %v252
      %769 = vmatmul.mubr.f32.gmra.mrb[0].mxu0 %v251
      %v770 = vpop.f32.mrb[0].mxu0
      %v771 = vadd.f32 %v672, %v770
      %v772 = vpop.f32.mrb[0].mxu0
      %773 = vmatprep.mubr.f32.mxu0 %v255
      %774 = vmatmul.mubr.f32.gmra.mrb[0].mxu0 %v254
      %v775 = vpop.f32.mrb[0].mxu0
      %v776 = vadd.f32 %v672, %v775
      %v777 = vpop.f32.mrb[0].mxu0
      %778 = vmatprep.mubr.f32.mxu0 %v258
      %779 = vmatmul.mubr.f32.gmra.mrb[0].mxu0 %v257
      %v780 = vpop.f32.mrb[0].mxu0
      %v781 = vadd.f32 %v672, %v780
      %v782 = vpop.f32.mrb[0].mxu0
      %783 = vmatprep.mubr.f32.mxu0 %v261
      %784 = vmatmul.mubr.f32.gmra.mrb[0].mxu0 %v260
      %v785 = vpop.f32.mrb[0].mxu0
      %v786 = vadd.f32 %v672, %v785
      %v787 = vpop.f32.mrb[0].mxu0
      %788 = vmatprep.mubr.f32.mxu0 %v264
      %789 = vmatmul.mubr.f32.gmra.mrb[0].mxu0 %v263
      %v790 = vpop.f32.mrb[0].mxu0
      %v791 = vadd.f32 %v672, %v790
      %v792 = vpop.f32.mrb[0].mxu0
      %793 = vmatprep.mubr.f32.mxu0 %v267
      %794 = vmatmul.mubr.f32.gmra.mrb[0].mxu0 %v266
      %v795 = vpop.f32.mrb[0].mxu0
      %v796 = vadd.f32 %v672, %v795
      %v797 = vpop.f32.mrb[0].mxu0
      %798 = vmatprep.mubr.f32.mxu0 %v270
      %799 = vmatmul.mubr.f32.gmra.mrb[0].mxu0 %v269
      %v800 = vpop.f32.mrb[0].mxu0
      %v801 = vadd.f32 %v672, %v800
      %v802 = vpop.f32.mrb[0].mxu0
      %803 = vmatprep.mubr.f32.mxu0 %v273
      %804 = vmatmul.mubr.f32.gmra.mrb[0].mxu0 %v272
      %v805 = vpop.f32.mrb[0].mxu0
      %v806 = vadd.f32 %v672, %v805
      %v807 = vpop.f32.mrb[0].mxu0
      %808 = vmatprep.mubr.f32.mxu0 %v276
      %809 = vmatmul.mubr.f32.gmra.mrb[0].mxu0 %v275
      %v810 = vpop.f32.mrb[0].mxu0
      %v811 = vadd.f32 %v672, %v810
      %v812 = vpop.f32.mrb[0].mxu0
      %813 = vmatprep.mubr.f32.mxu0 %v279
      %814 = vmatmul.mubr.f32.gmra.mrb[0].mxu0 %v278
      %v815 = vpop.f32.mrb[0].mxu0
      %v816 = vadd.f32 %v672, %v815
      %v817 = vpop.f32.mrb[0].mxu0
      %818 = vmatprep.mubr.f32.mxu0 %v282
      %819 = vmatmul.mubr.f32.gmra.mrb[0].mxu0 %v281
      %v820 = vpop.f32.mrb[0].mxu0
      %v821 = vadd.f32 %v672, %v820
      %v822 = vpop.f32.mrb[0].mxu0
      %823 = vmatprep.mubr.f32.mxu0 %v285
      %824 = vmatmul.mubr.f32.gmra.mrb[0].mxu0 %v284
      %v825 = vpop.f32.mrb[0].mxu0
      %v826 = vadd.f32 %v672, %v825
      %v827 = vpop.f32.mrb[0].mxu0
      %828 = vmatprep.mubr.f32.mxu0 %v288
      %829 = vmatmul.mubr.f32.gmra.mrb[0].mxu0 %v287
      %v830 = vpop.f32.mrb[0].mxu0
      %v831 = vadd.f32 %v672, %v830
      %v832 = vpop.f32.mrb[0].mxu0
      %833 = vmatprep.mubr.f32.mxu0 %v291
      %834 = vmatmul.mubr.f32.gmra.mrb[0].mxu0 %v290
      %v835 = vpop.f32.mrb[0].mxu0
      %v836 = vadd.f32 %v672, %v835
      %v837 = vpop.f32.mrb[0].mxu0
      %838 = vmatprep.mubr.f32.mxu0 %v294
      %839 = vmatmul.mubr.f32.gmra.mrb[0].mxu0 %v293
      %v840 = vpop.f32.mrb[0].mxu0
      %v841 = vadd.f32 %v672, %v840
      %v842 = vpop.f32.mrb[0].mxu0
      %843 = vmatprep.mubr.f32.mxu0 %v297
      %844 = vmatmul.mubr.f32.gmra.mrb[0].mxu0 %v296
      %v845 = vpop.f32.mrb[0].mxu0
      %v846 = vadd.f32 %v672, %v845
      %v847 = vpop.f32.mrb[0].mxu0
      %848 = vmatprep.mubr.f32.mxu0 %v300
      %849 = vmatmul.mubr.f32.gmra.mrb[0].mxu0 %v299
      %v850 = vpop.f32.mrb[0].mxu0
      %v851 = vadd.f32 %v672, %v850
      %v852 = vpop.f32.mrb[0].mxu0
      %853 = vmatprep.mubr.f32.mxu0 %v303
      %854 = vmatmul.mubr.f32.gmra.mrb[0].mxu0 %v302
      %v855 = vpop.f32.mrb[0].mxu0
      %v856 = vadd.f32 %v672, %v855
      %v857 = vpop.f32.mrb[0].mxu0
      %858 = vmatprep.mubr.f32.mxu0 %v306
      %859 = vmatmul.mubr.f32.gmra.mrb[0].mxu0 %v305
      %v860 = vpop.f32.mrb[0].mxu0
      %v861 = vadd.f32 %v672, %v860
      %v862 = vpop.f32.mrb[0].mxu0
      %863 = vmatprep.mubr.f32.mxu0 %v309
      %864 = vmatmul.mubr.f32.gmra.mrb[0].mxu0 %v308
      %v865 = vpop.f32.mrb[0].mxu0
      %v866 = vadd.f32 %v672, %v865
      %v867 = vpop.f32.mrb[0].mxu0
      %868 = vmatprep.mubr.f32.mxu0 %v312
      %869 = vmatmul.mubr.f32.gmra.mrb[0].mxu0 %v311
      %v870 = vpop.f32.mrb[0].mxu0
      %v871 = vadd.f32 %v672, %v870
      %v872 = vpop.f32.mrb[0].mxu0
      %873 = vmatprep.mubr.f32.mxu0 %v315
      %874 = vmatmul.mubr.f32.gmra.mrb[0].mxu0 %v314
      %v875 = vpop.f32.mrb[0].mxu0
      %v876 = vadd.f32 %v672, %v875
      %v877 = vpop.f32.mrb[0].mxu0
      %878 = vmatprep.mubr.f32.mxu0 %v318
      %879 = vmatmul.mubr.f32.gmra.mrb[0].mxu0 %v317
      %v880 = vpop.f32.mrb[0].mxu0
      %v881 = vadd.f32 %v672, %v880
      %v882 = vpop.f32.mrb[0].mxu0
      %883 = vmatprep.mubr.f32.mxu0 %v321
      %884 = vmatmul.mubr.f32.gmra.mrb[0].mxu0 %v320
      %v885 = vpop.f32.mrb[0].mxu0
      %v886 = vadd.f32 %v672, %v885
      %v887 = vpop.f32.mrb[0].mxu0
      %888 = vmatprep.mubr.f32.mxu0 %v324
      %889 = vmatmul.mubr.f32.gmra.mrb[0].mxu0 %v323
      %v890 = vpop.f32.mrb[0].mxu0
      %v891 = vadd.f32 %v672, %v890
      %v892 = vpop.f32.mrb[0].mxu0
      %893 = vmatprep.mubr.f32.mxu0 %v327
      %894 = vmatmul.mubr.f32.gmra.mrb[0].mxu0 %v326
      %v895 = vpop.f32.mrb[0].mxu0
      %v896 = vadd.f32 %v672, %v895
      %v897 = vpop.f32.mrb[0].mxu0
      %898 = vdwg.mxu0
      %899 = vmatprep.subr.mxu0 0.0
      %900 = vmatpush1.msra.mxu0 %v555
      %901 = vmatprep.subr.mxu0 0.0
      %902 = vmatpush1.msra.mxu0 %v556
      %903 = vmatprep.subr.mxu0 0.0
      %904 = vmatpush1.msra.mxu0 %v557
      %905 = vmatprep.subr.mxu0 0.0
      %906 = vmatpush1.msra.mxu0 %v558
      %907 = vmatprep.subr.mxu0 0.0
      %908 = vmatpush1.msra.mxu0 %v559
      %909 = vmatprep.subr.mxu0 0.0
      %910 = vmatpush1.msra.mxu0 %v560
      %911 = vmatprep.subr.mxu0 0.0
      %912 = vmatpush1.msra.mxu0 %v561
      %913 = vmatprep.subr.mxu0 0.0
      %914 = vmatpush1.msra.mxu0 %v562
      %915 = vmatprep.subr.mxu0 0.0
      %916 = vmatpush1.msra.mxu0 %v563
      %917 = vmatprep.subr.mxu0 0.0
      %918 = vmatpush1.msra.mxu0 %v564
      %919 = vmatprep.subr.mxu0 0.0
      %920 = vmatpush1.msra.mxu0 %v565
      %921 = vmatprep.subr.mxu0 0.0
      %922 = vmatpush1.msra.mxu0 %v566
      %923 = vmatprep.subr.mxu0 0.0
      %924 = vmatpush1.msra.mxu0 %v567
      %925 = vmatprep.subr.mxu0 0.0
      %926 = vmatpush1.msra.mxu0 %v568
      %927 = vmatprep.subr.mxu0 0.0
      %928 = vmatpush1.msra.mxu0 %v569
      %929 = vmatprep.subr.mxu0 0.0
      %930 = vmatpush1.msra.mxu0 %v570
      %931 = vmatprep.subr.mxu0 0.0
      %932 = vmatpush1.msra.mxu0 %v571
      %933 = vmatprep.subr.mxu0 0.0
      %934 = vmatpush1.msra.mxu0 %v572
      %935 = vmatprep.subr.mxu0 0.0
      %936 = vmatpush1.msra.mxu0 %v573
      %937 = vmatprep.subr.mxu0 0.0
      %938 = vmatpush1.msra.mxu0 %v574
      %939 = vmatprep.subr.mxu0 0.0
      %940 = vmatpush1.msra.mxu0 %v575
      %941 = vmatprep.subr.mxu0 0.0
      %942 = vmatpush1.msra.mxu0 %v576
      %943 = vmatprep.subr.mxu0 0.0
      %944 = vmatpush1.msra.mxu0 %v577
      %945 = vmatprep.subr.mxu0 0.0
      %946 = vmatpush1.msra.mxu0 %v578
      %947 = vmatprep.subr.mxu0 0.0
      %948 = vmatpush1.msra.mxu0 %v579
      %949 = vmatprep.subr.mxu0 0.0
      %950 = vmatpush1.msra.mxu0 %v580
      %951 = vmatprep.subr.mxu0 0.0
      %952 = vmatpush1.msra.mxu0 %v581
      %953 = vmatprep.subr.mxu0 0.0
      %954 = vmatpush1.msra.mxu0 %v582
      %955 = vmatprep.subr.mxu0 0.0
      %956 = vmatpush1.msra.mxu0 %v583
      %957 = vmatprep.subr.mxu0 0.0
      %958 = vmatpush1.msra.mxu0 %v584
      %959 = vmatprep.subr.mxu0 0.0
      %960 = vmatpush1.msra.mxu0 %v585
      %961 = vmatprep.subr.mxu0 0.0
      %962 = vmatpush1.msra.mxu0 %v586
      %963 = vmatprep.mubr.f32.mxu0 %v330
      %964 = vmatmul.mubr.f32.gmra.mrb[0].mxu0 %v235
      %v965 = vpop.f32.mrb[0].mxu0
      %v966 = vadd.f32 %v741, %v965
      %v967 = vpop.f32.mrb[0].mxu0
      %968 = vmatprep.mubr.f32.mxu0 %v333
      %969 = vmatmul.mubr.f32.gmra.mrb[0].mxu0 %v238
      %v970 = vpop.f32.mrb[0].mxu0
      %v971 = vadd.f32 %v746, %v970
      %v972 = vpop.f32.mrb[0].mxu0
      %973 = vmatprep.mubr.f32.mxu0 %v336
      %974 = vmatmul.mubr.f32.gmra.mrb[0].mxu0 %v241
      %v975 = vpop.f32.mrb[0].mxu0
      %v976 = vadd.f32 %v751, %v975
      %v977 = vpop.f32.mrb[0].mxu0
      %978 = vmatprep.mubr.f32.mxu0 %v339
      %979 = vmatmul.mubr.f32.gmra.mrb[0].mxu0 %v244
      %v980 = vpop.f32.mrb[0].mxu0
      %v981 = vadd.f32 %v756, %v980
      %v982 = vpop.f32.mrb[0].mxu0
      %983 = vmatprep.mubr.f32.mxu0 %v342
      %984 = vmatmul.mubr.f32.gmra.mrb[0].mxu0 %v247
      %v985 = vpop.f32.mrb[0].mxu0
      %v986 = vadd.f32 %v761, %v985
      %v987 = vpop.f32.mrb[0].mxu0
      %988 = vmatprep.mubr.f32.mxu0 %v345
      %989 = vmatmul.mubr.f32.gmra.mrb[0].mxu0 %v250
      %v990 = vpop.f32.mrb[0].mxu0
      %v991 = vadd.f32 %v766, %v990
      %v992 = vpop.f32.mrb[0].mxu0
      %993 = vmatprep.mubr.f32.mxu0 %v348
      %994 = vmatmul.mubr.f32.gmra.mrb[0].mxu0 %v253
      %v995 = vpop.f32.mrb[0].mxu0
      %v996 = vadd.f32 %v771, %v995
      %v997 = vpop.f32.mrb[0].mxu0
      %998 = vmatprep.mubr.f32.mxu0 %v351
      %999 = vmatmul.mubr.f32.gmra.mrb[0].mxu0 %v256
      %v1000 = vpop.f32.mrb[0].mxu0
      %v1001 = vadd.f32 %v776, %v1000
      %v1002 = vpop.f32.mrb[0].mxu0
      %1003 = vmatprep.mubr.f32.mxu0 %v354
      %1004 = vmatmul.mubr.f32.gmra.mrb[0].mxu0 %v259
      %v1005 = vpop.f32.mrb[0].mxu0
      %v1006 = vadd.f32 %v781, %v1005
      %v1007 = vpop.f32.mrb[0].mxu0
      %1008 = vmatprep.mubr.f32.mxu0 %v357
      %1009 = vmatmul.mubr.f32.gmra.mrb[0].mxu0 %v262
      %v1010 = vpop.f32.mrb[0].mxu0
      %v1011 = vadd.f32 %v786, %v1010
      %v1012 = vpop.f32.mrb[0].mxu0
      %1013 = vmatprep.mubr.f32.mxu0 %v360
      %1014 = vmatmul.mubr.f32.gmra.mrb[0].mxu0 %v265
      %v1015 = vpop.f32.mrb[0].mxu0
      %v1016 = vadd.f32 %v791, %v1015
      %v1017 = vpop.f32.mrb[0].mxu0
      %1018 = vmatprep.mubr.f32.mxu0 %v363
      %1019 = vmatmul.mubr.f32.gmra.mrb[0].mxu0 %v268
      %v1020 = vpop.f32.mrb[0].mxu0
      %v1021 = vadd.f32 %v796, %v1020
      %v1022 = vpop.f32.mrb[0].mxu0
      %1023 = vmatprep.mubr.f32.mxu0 %v366
      %1024 = vmatmul.mubr.f32.gmra.mrb[0].mxu0 %v271
      %v1025 = vpop.f32.mrb[0].mxu0
      %v1026 = vadd.f32 %v801, %v1025
      %v1027 = vpop.f32.mrb[0].mxu0
      %1028 = vmatprep.mubr.f32.mxu0 %v369
      %1029 = vmatmul.mubr.f32.gmra.mrb[0].mxu0 %v274
      %v1030 = vpop.f32.mrb[0].mxu0
      %v1031 = vadd.f32 %v806, %v1030
      %v1032 = vpop.f32.mrb[0].mxu0
      %1033 = vmatprep.mubr.f32.mxu0 %v372
      %1034 = vmatmul.mubr.f32.gmra.mrb[0].mxu0 %v277
      %v1035 = vpop.f32.mrb[0].mxu0
      %v1036 = vadd.f32 %v811, %v1035
      %v1037 = vpop.f32.mrb[0].mxu0
      %1038 = vmatprep.mubr.f32.mxu0 %v375
      %1039 = vmatmul.mubr.f32.gmra.mrb[0].mxu0 %v280
      %v1040 = vpop.f32.mrb[0].mxu0
      %v1041 = vadd.f32 %v816, %v1040
      %v1042 = vpop.f32.mrb[0].mxu0
      %1043 = vmatprep.mubr.f32.mxu0 %v378
      %1044 = vmatmul.mubr.f32.gmra.mrb[0].mxu0 %v283
      %v1045 = vpop.f32.mrb[0].mxu0
      %v1046 = vadd.f32 %v821, %v1045
      %v1047 = vpop.f32.mrb[0].mxu0
      %1048 = vmatprep.mubr.f32.mxu0 %v381
      %1049 = vmatmul.mubr.f32.gmra.mrb[0].mxu0 %v286
      %v1050 = vpop.f32.mrb[0].mxu0
      %v1051 = vadd.f32 %v826, %v1050
      %v1052 = vpop.f32.mrb[0].mxu0
      %1053 = vmatprep.mubr.f32.mxu0 %v384
      %1054 = vmatmul.mubr.f32.gmra.mrb[0].mxu0 %v289
      %v1055 = vpop.f32.mrb[0].mxu0
      %v1056 = vadd.f32 %v831, %v1055
      %v1057 = vpop.f32.mrb[0].mxu0
      %1058 = vmatprep.mubr.f32.mxu0 %v387
      %1059 = vmatmul.mubr.f32.gmra.mrb[0].mxu0 %v292
      %v1060 = vpop.f32.mrb[0].mxu0
      %v1061 = vadd.f32 %v836, %v1060
      %v1062 = vpop.f32.mrb[0].mxu0
      %1063 = vmatprep.mubr.f32.mxu0 %v390
      %1064 = vmatmul.mubr.f32.gmra.mrb[0].mxu0 %v295
      %v1065 = vpop.f32.mrb[0].mxu0
      %v1066 = vadd.f32 %v841, %v1065
      %v1067 = vpop.f32.mrb[0].mxu0
      %1068 = vmatprep.mubr.f32.mxu0 %v393
      %1069 = vmatmul.mubr.f32.gmra.mrb[0].mxu0 %v298
      %v1070 = vpop.f32.mrb[0].mxu0
      %v1071 = vadd.f32 %v846, %v1070
      %v1072 = vpop.f32.mrb[0].mxu0
      %1073 = vmatprep.mubr.f32.mxu0 %v396
      %1074 = vmatmul.mubr.f32.gmra.mrb[0].mxu0 %v301
      %v1075 = vpop.f32.mrb[0].mxu0
      %v1076 = vadd.f32 %v851, %v1075
      %v1077 = vpop.f32.mrb[0].mxu0
      %1078 = vmatprep.mubr.f32.mxu0 %v399
      %1079 = vmatmul.mubr.f32.gmra.mrb[0].mxu0 %v304
      %v1080 = vpop.f32.mrb[0].mxu0
      %v1081 = vadd.f32 %v856, %v1080
      %v1082 = vpop.f32.mrb[0].mxu0
      %1083 = vmatprep.mubr.f32.mxu0 %v402
      %1084 = vmatmul.mubr.f32.gmra.mrb[0].mxu0 %v307
      %v1085 = vpop.f32.mrb[0].mxu0
      %v1086 = vadd.f32 %v861, %v1085
      %v1087 = vpop.f32.mrb[0].mxu0
      %1088 = vmatprep.mubr.f32.mxu0 %v405
      %1089 = vmatmul.mubr.f32.gmra.mrb[0].mxu0 %v310
      %v1090 = vpop.f32.mrb[0].mxu0
      %v1091 = vadd.f32 %v866, %v1090
      %v1092 = vpop.f32.mrb[0].mxu0
      %1093 = vmatprep.mubr.f32.mxu0 %v408
      %1094 = vmatmul.mubr.f32.gmra.mrb[0].mxu0 %v313
      %v1095 = vpop.f32.mrb[0].mxu0
      %v1096 = vadd.f32 %v871, %v1095
      %v1097 = vpop.f32.mrb[0].mxu0
      %1098 = vmatprep.mubr.f32.mxu0 %v411
      %1099 = vmatmul.mubr.f32.gmra.mrb[0].mxu0 %v316
      %v1100 = vpop.f32.mrb[0].mxu0
      %v1101 = vadd.f32 %v876, %v1100
      %v1102 = vpop.f32.mrb[0].mxu0
      %1103 = vmatprep.mubr.f32.mxu0 %v414
      %1104 = vmatmul.mubr.f32.gmra.mrb[0].mxu0 %v319
      %v1105 = vpop.f32.mrb[0].mxu0
      %v1106 = vadd.f32 %v881, %v1105
      %v1107 = vpop.f32.mrb[0].mxu0
      %1108 = vmatprep.mubr.f32.mxu0 %v417
      %1109 = vmatmul.mubr.f32.gmra.mrb[0].mxu0 %v322
      %v1110 = vpop.f32.mrb[0].mxu0
      %v1111 = vadd.f32 %v886, %v1110
      %v1112 = vpop.f32.mrb[0].mxu0
      %1113 = vmatprep.mubr.f32.mxu0 %v420
      %1114 = vmatmul.mubr.f32.gmra.mrb[0].mxu0 %v325
      %v1115 = vpop.f32.mrb[0].mxu0
      %v1116 = vadd.f32 %v891, %v1115
      %v1117 = vpop.f32.mrb[0].mxu0
      %1118 = vmatprep.mubr.f32.mxu0 %v423
      %1119 = vmatmul.mubr.f32.gmra.mrb[0].mxu0 %v328
      %v1120 = vpop.f32.mrb[0].mxu0
      %v1121 = vadd.f32 %v896, %v1120
      %v1122 = vpop.f32.mrb[0].mxu0
      %1123 = vdwg.mxu0
      %1124 = vmatprep.subr.mxu0 0.0
      %1125 = vmatpush1.msra.mxu0 %v587
      %1126 = vmatprep.subr.mxu0 0.0
      %1127 = vmatpush1.msra.mxu0 %v588
      %1128 = vmatprep.subr.mxu0 0.0
      %1129 = vmatpush1.msra.mxu0 %v589
      %1130 = vmatprep.subr.mxu0 0.0
      %1131 = vmatpush1.msra.mxu0 %v590
      %1132 = vmatprep.subr.mxu0 0.0
      %1133 = vmatpush1.msra.mxu0 %v591
      %1134 = vmatprep.subr.mxu0 0.0
      %1135 = vmatpush1.msra.mxu0 %v592
      %1136 = vmatprep.subr.mxu0 0.0
      %1137 = vmatpush1.msra.mxu0 %v593
      %1138 = vmatprep.subr.mxu0 0.0
      %1139 = vmatpush1.msra.mxu0 %v594
      %1140 = vmatprep.subr.mxu0 0.0
      %1141 = vmatpush1.msra.mxu0 %v595
      %1142 = vmatprep.subr.mxu0 0.0
      %1143 = vmatpush1.msra.mxu0 %v596
      %1144 = vmatprep.subr.mxu0 0.0
      %1145 = vmatpush1.msra.mxu0 %v597
      %1146 = vmatprep.subr.mxu0 0.0
      %1147 = vmatpush1.msra.mxu0 %v598
      %1148 = vmatprep.subr.mxu0 0.0
      %1149 = vmatpush1.msra.mxu0 %v599
      %1150 = vmatprep.subr.mxu0 0.0
      %1151 = vmatpush1.msra.mxu0 %v600
      %1152 = vmatprep.subr.mxu0 0.0
      %1153 = vmatpush1.msra.mxu0 %v601
      %1154 = vmatprep.subr.mxu0 0.0
      %1155 = vmatpush1.msra.mxu0 %v602
      %1156 = vmatprep.subr.mxu0 0.0
      %1157 = vmatpush1.msra.mxu0 %v603
      %1158 = vmatprep.subr.mxu0 0.0
      %1159 = vmatpush1.msra.mxu0 %v604
      %1160 = vmatprep.subr.mxu0 0.0
      %1161 = vmatpush1.msra.mxu0 %v605
      %1162 = vmatprep.subr.mxu0 0.0
      %1163 = vmatpush1.msra.mxu0 %v606
      %1164 = vmatprep.subr.mxu0 0.0
      %1165 = vmatpush1.msra.mxu0 %v607
      %1166 = vmatprep.subr.mxu0 0.0
      %1167 = vmatpush1.msra.mxu0 %v608
      %1168 = vmatprep.subr.mxu0 0.0
      %1169 = vmatpush1.msra.mxu0 %v609
      %1170 = vmatprep.subr.mxu0 0.0
      %1171 = vmatpush1.msra.mxu0 %v610
      %1172 = vmatprep.subr.mxu0 0.0
      %1173 = vmatpush1.msra.mxu0 %v611
      %1174 = vmatprep.subr.mxu0 0.0
      %1175 = vmatpush1.msra.mxu0 %v612
      %1176 = vmatprep.subr.mxu0 0.0
      %1177 = vmatpush1.msra.mxu0 %v613
      %1178 = vmatprep.subr.mxu0 0.0
      %1179 = vmatpush1.msra.mxu0 %v614
      %1180 = vmatprep.subr.mxu0 0.0
      %1181 = vmatpush1.msra.mxu0 %v615
      %1182 = vmatprep.subr.mxu0 0.0
      %1183 = vmatpush1.msra.mxu0 %v616
      %1184 = vmatprep.subr.mxu0 0.0
      %1185 = vmatpush1.msra.mxu0 %v617
      %1186 = vmatprep.subr.mxu0 0.0
      %1187 = vmatpush1.msra.mxu0 %v618
      %1188 = vmatprep.mubr.f32.mxu0 %v332
      %1189 = vmatmul.mubr.f32.gmra.mrb[0].mxu0 %v331
      %v1190 = vpop.f32.mrb[0].mxu0
      %v1191 = vadd.f32 %v966, %v1190
      %v1192 = vpop.f32.mrb[0].mxu0
      %1193 = vmatprep.mubr.f32.mxu0 %v335
      %1194 = vmatmul.mubr.f32.gmra.mrb[0].mxu0 %v334
      %v1195 = vpop.f32.mrb[0].mxu0
      %v1196 = vadd.f32 %v971, %v1195
      %v1197 = vpop.f32.mrb[0].mxu0
      %1198 = vmatprep.mubr.f32.mxu0 %v338
      %1199 = vmatmul.mubr.f32.gmra.mrb[0].mxu0 %v337
      %v1200 = vpop.f32.mrb[0].mxu0
      %v1201 = vadd.f32 %v976, %v1200
      %v1202 = vpop.f32.mrb[0].mxu0
      %1203 = vmatprep.mubr.f32.mxu0 %v341
      %1204 = vmatmul.mubr.f32.gmra.mrb[0].mxu0 %v340
      %v1205 = vpop.f32.mrb[0].mxu0
      %v1206 = vadd.f32 %v981, %v1205
      %v1207 = vpop.f32.mrb[0].mxu0
      %1208 = vmatprep.mubr.f32.mxu0 %v344
      %1209 = vmatmul.mubr.f32.gmra.mrb[0].mxu0 %v343
      %v1210 = vpop.f32.mrb[0].mxu0
      %v1211 = vadd.f32 %v986, %v1210
      %v1212 = vpop.f32.mrb[0].mxu0
      %1213 = vmatprep.mubr.f32.mxu0 %v347
      %1214 = vmatmul.mubr.f32.gmra.mrb[0].mxu0 %v346
      %v1215 = vpop.f32.mrb[0].mxu0
      %v1216 = vadd.f32 %v991, %v1215
      %v1217 = vpop.f32.mrb[0].mxu0
      %1218 = vmatprep.mubr.f32.mxu0 %v350
      %1219 = vmatmul.mubr.f32.gmra.mrb[0].mxu0 %v349
      %v1220 = vpop.f32.mrb[0].mxu0
      %v1221 = vadd.f32 %v996, %v1220
      %v1222 = vpop.f32.mrb[0].mxu0
      %1223 = vmatprep.mubr.f32.mxu0 %v353
      %1224 = vmatmul.mubr.f32.gmra.mrb[0].mxu0 %v352
      %v1225 = vpop.f32.mrb[0].mxu0
      %v1226 = vadd.f32 %v1001, %v1225
      %v1227 = vpop.f32.mrb[0].mxu0
      %1228 = vmatprep.mubr.f32.mxu0 %v356
      %1229 = vmatmul.mubr.f32.gmra.mrb[0].mxu0 %v355
      %v1230 = vpop.f32.mrb[0].mxu0
      %v1231 = vadd.f32 %v1006, %v1230
      %v1232 = vpop.f32.mrb[0].mxu0
      %1233 = vmatprep.mubr.f32.mxu0 %v359
      %1234 = vmatmul.mubr.f32.gmra.mrb[0].mxu0 %v358
      %v1235 = vpop.f32.mrb[0].mxu0
      %v1236 = vadd.f32 %v1011, %v1235
      %v1237 = vpop.f32.mrb[0].mxu0
      %1238 = vmatprep.mubr.f32.mxu0 %v362
      %1239 = vmatmul.mubr.f32.gmra.mrb[0].mxu0 %v361
      %v1240 = vpop.f32.mrb[0].mxu0
      %v1241 = vadd.f32 %v1016, %v1240
      %v1242 = vpop.f32.mrb[0].mxu0
      %1243 = vmatprep.mubr.f32.mxu0 %v365
      %1244 = vmatmul.mubr.f32.gmra.mrb[0].mxu0 %v364
      %v1245 = vpop.f32.mrb[0].mxu0
      %v1246 = vadd.f32 %v1021, %v1245
      %v1247 = vpop.f32.mrb[0].mxu0
      %1248 = vmatprep.mubr.f32.mxu0 %v368
      %1249 = vmatmul.mubr.f32.gmra.mrb[0].mxu0 %v367
      %v1250 = vpop.f32.mrb[0].mxu0
      %v1251 = vadd.f32 %v1026, %v1250
      %v1252 = vpop.f32.mrb[0].mxu0
      %1253 = vmatprep.mubr.f32.mxu0 %v371
      %1254 = vmatmul.mubr.f32.gmra.mrb[0].mxu0 %v370
      %v1255 = vpop.f32.mrb[0].mxu0
      %v1256 = vadd.f32 %v1031, %v1255
      %v1257 = vpop.f32.mrb[0].mxu0
      %1258 = vmatprep.mubr.f32.mxu0 %v374
      %1259 = vmatmul.mubr.f32.gmra.mrb[0].mxu0 %v373
      %v1260 = vpop.f32.mrb[0].mxu0
      %v1261 = vadd.f32 %v1036, %v1260
      %v1262 = vpop.f32.mrb[0].mxu0
      %1263 = vmatprep.mubr.f32.mxu0 %v377
      %1264 = vmatmul.mubr.f32.gmra.mrb[0].mxu0 %v376
      %v1265 = vpop.f32.mrb[0].mxu0
      %v1266 = vadd.f32 %v1041, %v1265
      %v1267 = vpop.f32.mrb[0].mxu0
      %1268 = vmatprep.mubr.f32.mxu0 %v380
      %1269 = vmatmul.mubr.f32.gmra.mrb[0].mxu0 %v379
      %v1270 = vpop.f32.mrb[0].mxu0
      %v1271 = vadd.f32 %v1046, %v1270
      %v1272 = vpop.f32.mrb[0].mxu0
      %1273 = vmatprep.mubr.f32.mxu0 %v383
      %1274 = vmatmul.mubr.f32.gmra.mrb[0].mxu0 %v382
      %v1275 = vpop.f32.mrb[0].mxu0
      %v1276 = vadd.f32 %v1051, %v1275
      %v1277 = vpop.f32.mrb[0].mxu0
      %1278 = vmatprep.mubr.f32.mxu0 %v386
      %1279 = vmatmul.mubr.f32.gmra.mrb[0].mxu0 %v385
      %v1280 = vpop.f32.mrb[0].mxu0
      %v1281 = vadd.f32 %v1056, %v1280
      %v1282 = vpop.f32.mrb[0].mxu0
      %1283 = vmatprep.mubr.f32.mxu0 %v389
      %1284 = vmatmul.mubr.f32.gmra.mrb[0].mxu0 %v388
      %v1285 = vpop.f32.mrb[0].mxu0
      %v1286 = vadd.f32 %v1061, %v1285
      %v1287 = vpop.f32.mrb[0].mxu0
      %1288 = vmatprep.mubr.f32.mxu0 %v392
      %1289 = vmatmul.mubr.f32.gmra.mrb[0].mxu0 %v391
      %v1290 = vpop.f32.mrb[0].mxu0
      %v1291 = vadd.f32 %v1066, %v1290
      %v1292 = vpop.f32.mrb[0].mxu0
      %1293 = vmatprep.mubr.f32.mxu0 %v395
      %1294 = vmatmul.mubr.f32.gmra.mrb[0].mxu0 %v394
      %v1295 = vpop.f32.mrb[0].mxu0
      %v1296 = vadd.f32 %v1071, %v1295
      %v1297 = vpop.f32.mrb[0].mxu0
      %1298 = vmatprep.mubr.f32.mxu0 %v398
      %1299 = vmatmul.mubr.f32.gmra.mrb[0].mxu0 %v397
      %v1300 = vpop.f32.mrb[0].mxu0
      %v1301 = vadd.f32 %v1076, %v1300
      %v1302 = vpop.f32.mrb[0].mxu0
      %1303 = vmatprep.mubr.f32.mxu0 %v401
      %1304 = vmatmul.mubr.f32.gmra.mrb[0].mxu0 %v400
      %v1305 = vpop.f32.mrb[0].mxu0
      %v1306 = vadd.f32 %v1081, %v1305
      %v1307 = vpop.f32.mrb[0].mxu0
      %1308 = vmatprep.mubr.f32.mxu0 %v404
      %1309 = vmatmul.mubr.f32.gmra.mrb[0].mxu0 %v403
      %v1310 = vpop.f32.mrb[0].mxu0
      %v1311 = vadd.f32 %v1086, %v1310
      %v1312 = vpop.f32.mrb[0].mxu0
      %1313 = vmatprep.mubr.f32.mxu0 %v407
      %1314 = vmatmul.mubr.f32.gmra.mrb[0].mxu0 %v406
      %v1315 = vpop.f32.mrb[0].mxu0
      %v1316 = vadd.f32 %v1091, %v1315
      %v1317 = vpop.f32.mrb[0].mxu0
      %1318 = vmatprep.mubr.f32.mxu0 %v410
      %1319 = vmatmul.mubr.f32.gmra.mrb[0].mxu0 %v409
      %v1320 = vpop.f32.mrb[0].mxu0
      %v1321 = vadd.f32 %v1096, %v1320
      %v1322 = vpop.f32.mrb[0].mxu0
      %1323 = vmatprep.mubr.f32.mxu0 %v413
      %1324 = vmatmul.mubr.f32.gmra.mrb[0].mxu0 %v412
      %v1325 = vpop.f32.mrb[0].mxu0
      %v1326 = vadd.f32 %v1101, %v1325
      %v1327 = vpop.f32.mrb[0].mxu0
      %1328 = vmatprep.mubr.f32.mxu0 %v416
      %1329 = vmatmul.mubr.f32.gmra.mrb[0].mxu0 %v415
      %v1330 = vpop.f32.mrb[0].mxu0
      %v1331 = vadd.f32 %v1106, %v1330
      %v1332 = vpop.f32.mrb[0].mxu0
      %1333 = vmatprep.mubr.f32.mxu0 %v419
      %1334 = vmatmul.mubr.f32.gmra.mrb[0].mxu0 %v418
      %v1335 = vpop.f32.mrb[0].mxu0
      %v1336 = vadd.f32 %v1111, %v1335
      %v1337 = vpop.f32.mrb[0].mxu0
      %1338 = vmatprep.mubr.f32.mxu0 %v422
      %1339 = vmatmul.mubr.f32.gmra.mrb[0].mxu0 %v421
      %v1340 = vpop.f32.mrb[0].mxu0
      %v1341 = vadd.f32 %v1116, %v1340
      %v1342 = vpop.f32.mrb[0].mxu0
      %1343 = vmatprep.mubr.f32.mxu0 %v425
      %1344 = vmatmul.mubr.f32.gmra.mrb[0].mxu0 %v424
      %v1345 = vpop.f32.mrb[0].mxu0
      %v1346 = vadd.f32 %v1121, %v1345
      %v1347 = vpop.f32.mrb[0].mxu0
      %1348 = vdwg.mxu0
      %1349 = vmatprep.subr.mxu0 0.0
      %1350 = vmatpush1.msra.mxu0 %v619
      %1351 = vmatprep.subr.mxu0 0.0
      %1352 = vmatpush1.msra.mxu0 %v620
      %1353 = vmatprep.subr.mxu0 0.0
      %1354 = vmatpush1.msra.mxu0 %v621
      %1355 = vmatprep.subr.mxu0 0.0
      %1356 = vmatpush1.msra.mxu0 %v622
      %1357 = vmatprep.subr.mxu0 0.0
      %1358 = vmatpush1.msra.mxu0 %v623
      %1359 = vmatprep.subr.mxu0 0.0
      %1360 = vmatpush1.msra.mxu0 %v624
      %1361 = vmatprep.subr.mxu0 0.0
      %1362 = vmatpush1.msra.mxu0 %v625
      %1363 = vmatprep.subr.mxu0 0.0
      %1364 = vmatpush1.msra.mxu0 %v626
      %1365 = vmatprep.subr.mxu0 0.0
      %1366 = vmatpush1.msra.mxu0 %v627
      %1367 = vmatprep.subr.mxu0 0.0
      %1368 = vmatpush1.msra.mxu0 %v628
      %1369 = vmatprep.subr.mxu0 0.0
      %1370 = vmatpush1.msra.mxu0 %v629
      %1371 = vmatprep.subr.mxu0 0.0
      %1372 = vmatpush1.msra.mxu0 %v630
      %1373 = vmatprep.subr.mxu0 0.0
      %1374 = vmatpush1.msra.mxu0 %v631
      %1375 = vmatprep.subr.mxu0 0.0
      %1376 = vmatpush1.msra.mxu0 %v632
      %1377 = vmatprep.subr.mxu0 0.0
      %1378 = vmatpush1.msra.mxu0 %v633
      %1379 = vmatprep.subr.mxu0 0.0
      %1380 = vmatpush1.msra.mxu0 %v634
      %1381 = vmatprep.subr.mxu0 0.0
      %1382 = vmatpush1.msra.mxu0 %v635
      %1383 = vmatprep.subr.mxu0 0.0
      %1384 = vmatpush1.msra.mxu0 %v636
      %1385 = vmatprep.subr.mxu0 0.0
      %1386 = vmatpush1.msra.mxu0 %v637
      %1387 = vmatprep.subr.mxu0 0.0
      %1388 = vmatpush1.msra.mxu0 %v638
      %1389 = vmatprep.subr.mxu0 0.0
      %1390 = vmatpush1.msra.mxu0 %v639
      %1391 = vmatprep.subr.mxu0 0.0
      %1392 = vmatpush1.msra.mxu0 %v640
      %1393 = vmatprep.subr.mxu0 0.0
      %1394 = vmatpush1.msra.mxu0 %v641
      %1395 = vmatprep.subr.mxu0 0.0
      %1396 = vmatpush1.msra.mxu0 %v642
      %1397 = vmatprep.subr.mxu0 0.0
      %1398 = vmatpush1.msra.mxu0 %v643
      %1399 = vmatprep.subr.mxu0 0.0
      %1400 = vmatpush1.msra.mxu0 %v644
      %1401 = vmatprep.subr.mxu0 0.0
      %1402 = vmatpush1.msra.mxu0 %v645
      %1403 = vmatprep.subr.mxu0 0.0
      %1404 = vmatpush1.msra.mxu0 %v646
      %1405 = vmatprep.subr.mxu0 0.0
      %1406 = vmatpush1.msra.mxu0 %v647
      %1407 = vmatprep.subr.mxu0 0.0
      %1408 = vmatpush1.msra.mxu0 %v648
      %1409 = vmatprep.subr.mxu0 0.0
      %1410 = vmatpush1.msra.mxu0 %v649
      %1411 = vmatprep.subr.mxu0 0.0
      %1412 = vmatpush1.msra.mxu0 %v650
      %1413 = vmatprep.mubr.f32.mxu0 %v428
      %1414 = vmatmul.mubr.f32.gmra.mrb[0].mxu0 %v427
      %v1415 = vpop.f32.mrb[0].mxu0
      %v1416 = vadd.f32 %v1191, %v1415
      %v1417 = vpop.f32.mrb[0].mxu0
      %1418 = vmatprep.mubr.f32.mxu0 %v431
      %1419 = vmatmul.mubr.f32.gmra.mrb[0].mxu0 %v430
      %v1420 = vpop.f32.mrb[0].mxu0
      %v1421 = vadd.f32 %v1196, %v1420
      %v1422 = vpop.f32.mrb[0].mxu0
      %1423 = vmatprep.mubr.f32.mxu0 %v434
      %1424 = vmatmul.mubr.f32.gmra.mrb[0].mxu0 %v433
      %v1425 = vpop.f32.mrb[0].mxu0
      %v1426 = vadd.f32 %v1201, %v1425
      %v1427 = vpop.f32.mrb[0].mxu0
      %1428 = vmatprep.mubr.f32.mxu0 %v437
      %1429 = vmatmul.mubr.f32.gmra.mrb[0].mxu0 %v436
      %v1430 = vpop.f32.mrb[0].mxu0
      %v1431 = vadd.f32 %v1206, %v1430
      %v1432 = vpop.f32.mrb[0].mxu0
      %1433 = vmatprep.mubr.f32.mxu0 %v440
      %1434 = vmatmul.mubr.f32.gmra.mrb[0].mxu0 %v439
      %v1435 = vpop.f32.mrb[0].mxu0
      %v1436 = vadd.f32 %v1211, %v1435
      %v1437 = vpop.f32.mrb[0].mxu0
      %1438 = vmatprep.mubr.f32.mxu0 %v443
      %1439 = vmatmul.mubr.f32.gmra.mrb[0].mxu0 %v442
      %v1440 = vpop.f32.mrb[0].mxu0
      %v1441 = vadd.f32 %v1216, %v1440
      %v1442 = vpop.f32.mrb[0].mxu0
      %1443 = vmatprep.mubr.f32.mxu0 %v446
      %1444 = vmatmul.mubr.f32.gmra.mrb[0].mxu0 %v445
      %v1445 = vpop.f32.mrb[0].mxu0
      %v1446 = vadd.f32 %v1221, %v1445
      %v1447 = vpop.f32.mrb[0].mxu0
      %1448 = vmatprep.mubr.f32.mxu0 %v449
      %1449 = vmatmul.mubr.f32.gmra.mrb[0].mxu0 %v448
      %v1450 = vpop.f32.mrb[0].mxu0
      %v1451 = vadd.f32 %v1226, %v1450
      %v1452 = vpop.f32.mrb[0].mxu0
      %1453 = vmatprep.mubr.f32.mxu0 %v452
      %1454 = vmatmul.mubr.f32.gmra.mrb[0].mxu0 %v451
      %v1455 = vpop.f32.mrb[0].mxu0
      %v1456 = vadd.f32 %v1231, %v1455
      %v1457 = vpop.f32.mrb[0].mxu0
      %1458 = vmatprep.mubr.f32.mxu0 %v455
      %1459 = vmatmul.mubr.f32.gmra.mrb[0].mxu0 %v454
      %v1460 = vpop.f32.mrb[0].mxu0
      %v1461 = vadd.f32 %v1236, %v1460
      %v1462 = vpop.f32.mrb[0].mxu0
      %1463 = vmatprep.mubr.f32.mxu0 %v458
      %1464 = vmatmul.mubr.f32.gmra.mrb[0].mxu0 %v457
      %v1465 = vpop.f32.mrb[0].mxu0
      %v1466 = vadd.f32 %v1241, %v1465
      %v1467 = vpop.f32.mrb[0].mxu0
      %1468 = vmatprep.mubr.f32.mxu0 %v461
      %1469 = vmatmul.mubr.f32.gmra.mrb[0].mxu0 %v460
      %v1470 = vpop.f32.mrb[0].mxu0
      %v1471 = vadd.f32 %v1246, %v1470
      %v1472 = vpop.f32.mrb[0].mxu0
      %1473 = vmatprep.mubr.f32.mxu0 %v464
      %1474 = vmatmul.mubr.f32.gmra.mrb[0].mxu0 %v463
      %v1475 = vpop.f32.mrb[0].mxu0
      %v1476 = vadd.f32 %v1251, %v1475
      %v1477 = vpop.f32.mrb[0].mxu0
      %1478 = vmatprep.mubr.f32.mxu0 %v467
      %1479 = vmatmul.mubr.f32.gmra.mrb[0].mxu0 %v466
      %v1480 = vpop.f32.mrb[0].mxu0
      %v1481 = vadd.f32 %v1256, %v1480
      %v1482 = vpop.f32.mrb[0].mxu0
      %1483 = vmatprep.mubr.f32.mxu0 %v470
      %1484 = vmatmul.mubr.f32.gmra.mrb[0].mxu0 %v469
      %v1485 = vpop.f32.mrb[0].mxu0
      %v1486 = vadd.f32 %v1261, %v1485
      %v1487 = vpop.f32.mrb[0].mxu0
      %1488 = vmatprep.mubr.f32.mxu0 %v473
      %1489 = vmatmul.mubr.f32.gmra.mrb[0].mxu0 %v472
      %v1490 = vpop.f32.mrb[0].mxu0
      %v1491 = vadd.f32 %v1266, %v1490
      %v1492 = vpop.f32.mrb[0].mxu0
      %1493 = vmatprep.mubr.f32.mxu0 %v476
      %1494 = vmatmul.mubr.f32.gmra.mrb[0].mxu0 %v475
      %v1495 = vpop.f32.mrb[0].mxu0
      %v1496 = vadd.f32 %v1271, %v1495
      %v1497 = vpop.f32.mrb[0].mxu0
      %1498 = vmatprep.mubr.f32.mxu0 %v479
      %1499 = vmatmul.mubr.f32.gmra.mrb[0].mxu0 %v478
      %v1500 = vpop.f32.mrb[0].mxu0
      %v1501 = vadd.f32 %v1276, %v1500
      %v1502 = vpop.f32.mrb[0].mxu0
      %1503 = vmatprep.mubr.f32.mxu0 %v482
      %1504 = vmatmul.mubr.f32.gmra.mrb[0].mxu0 %v481
      %v1505 = vpop.f32.mrb[0].mxu0
      %v1506 = vadd.f32 %v1281, %v1505
      %v1507 = vpop.f32.mrb[0].mxu0
      %1508 = vmatprep.mubr.f32.mxu0 %v485
      %1509 = vmatmul.mubr.f32.gmra.mrb[0].mxu0 %v484
      %v1510 = vpop.f32.mrb[0].mxu0
      %v1511 = vadd.f32 %v1286, %v1510
      %v1512 = vpop.f32.mrb[0].mxu0
      %1513 = vmatprep.mubr.f32.mxu0 %v488
      %1514 = vmatmul.mubr.f32.gmra.mrb[0].mxu0 %v487
      %v1515 = vpop.f32.mrb[0].mxu0
      %v1516 = vadd.f32 %v1291, %v1515
      %v1517 = vpop.f32.mrb[0].mxu0
      %1518 = vmatprep.mubr.f32.mxu0 %v491
      %1519 = vmatmul.mubr.f32.gmra.mrb[0].mxu0 %v490
      %v1520 = vpop.f32.mrb[0].mxu0
      %v1521 = vadd.f32 %v1296, %v1520
      %v1522 = vpop.f32.mrb[0].mxu0
      %1523 = vmatprep.mubr.f32.mxu0 %v494
      %1524 = vmatmul.mubr.f32.gmra.mrb[0].mxu0 %v493
      %v1525 = vpop.f32.mrb[0].mxu0
      %v1526 = vadd.f32 %v1301, %v1525
      %v1527 = vpop.f32.mrb[0].mxu0
      %1528 = vmatprep.mubr.f32.mxu0 %v497
      %1529 = vmatmul.mubr.f32.gmra.mrb[0].mxu0 %v496
      %v1530 = vpop.f32.mrb[0].mxu0
      %v1531 = vadd.f32 %v1306, %v1530
      %v1532 = vpop.f32.mrb[0].mxu0
      %1533 = vmatprep.mubr.f32.mxu0 %v500
      %1534 = vmatmul.mubr.f32.gmra.mrb[0].mxu0 %v499
      %v1535 = vpop.f32.mrb[0].mxu0
      %v1536 = vadd.f32 %v1311, %v1535
      %v1537 = vpop.f32.mrb[0].mxu0
      %1538 = vmatprep.mubr.f32.mxu0 %v503
      %1539 = vmatmul.mubr.f32.gmra.mrb[0].mxu0 %v502
      %v1540 = vpop.f32.mrb[0].mxu0
      %v1541 = vadd.f32 %v1316, %v1540
      %v1542 = vpop.f32.mrb[0].mxu0
      %1543 = vmatprep.mubr.f32.mxu0 %v506
      %1544 = vmatmul.mubr.f32.gmra.mrb[0].mxu0 %v505
      %v1545 = vpop.f32.mrb[0].mxu0
      %v1546 = vadd.f32 %v1321, %v1545
      %v1547 = vpop.f32.mrb[0].mxu0
      %1548 = vmatprep.mubr.f32.mxu0 %v509
      %1549 = vmatmul.mubr.f32.gmra.mrb[0].mxu0 %v508
      %v1550 = vpop.f32.mrb[0].mxu0
      %v1551 = vadd.f32 %v1326, %v1550
      %v1552 = vpop.f32.mrb[0].mxu0
      %1553 = vmatprep.mubr.f32.mxu0 %v512
      %1554 = vmatmul.mubr.f32.gmra.mrb[0].mxu0 %v511
      %v1555 = vpop.f32.mrb[0].mxu0
      %v1556 = vadd.f32 %v1331, %v1555
      %v1557 = vpop.f32.mrb[0].mxu0
      %1558 = vmatprep.mubr.f32.mxu0 %v515
      %1559 = vmatmul.mubr.f32.gmra.mrb[0].mxu0 %v514
      %v1560 = vpop.f32.mrb[0].mxu0
      %v1561 = vadd.f32 %v1336, %v1560
      %v1562 = vpop.f32.mrb[0].mxu0
      %1563 = vmatprep.mubr.f32.mxu0 %v518
      %1564 = vmatmul.mubr.f32.gmra.mrb[0].mxu0 %v517
      %v1565 = vpop.f32.mrb[0].mxu0
      %v1566 = vadd.f32 %v1341, %v1565
      %v1567 = vpop.f32.mrb[0].mxu0
      %1568 = vmatprep.mubr.f32.mxu0 %v521
      %1569 = vmatmul.mubr.f32.gmra.mrb[0].mxu0 %v520
      %v1570 = vpop.f32.mrb[0].mxu0
      %v1571 = vadd.f32 %v1346, %v1570
      %v1572 = vpop.f32.mrb[0].mxu0
      %1573 = vdwg.mxu0
      %1574 = vmatprep.subr.mxu0 0.0
      %1575 = vmatpush1.msra.mxu0 %v651
      %1576 = vmatprep.subr.mxu0 0.0
      %1577 = vmatpush1.msra.mxu0 %v652
      %1578 = vmatprep.subr.mxu0 0.0
      %1579 = vmatpush1.msra.mxu0 %v653
      %1580 = vmatprep.subr.mxu0 0.0
      %1581 = vmatpush1.msra.mxu0 %v654
      %1582 = vmatprep.subr.mxu0 0.0
      %1583 = vmatpush1.msra.mxu0 %v655
      %1584 = vmatprep.subr.mxu0 0.0
      %1585 = vmatpush1.msra.mxu0 %v656
      %1586 = vmatprep.subr.mxu0 0.0
      %1587 = vmatpush1.msra.mxu0 %v657
      %1588 = vmatprep.subr.mxu0 0.0
      %1589 = vmatpush1.msra.mxu0 %v658
      %1590 = vmatprep.subr.mxu0 0.0
      %1591 = vmatpush1.msra.mxu0 %v659
      %1592 = vmatprep.subr.mxu0 0.0
      %1593 = vmatpush1.msra.mxu0 %v660
      %1594 = vmatprep.subr.mxu0 0.0
      %1595 = vmatpush1.msra.mxu0 %v661
      %1596 = vmatprep.subr.mxu0 0.0
      %1597 = vmatpush1.msra.mxu0 %v662
      %1598 = vmatprep.subr.mxu0 0.0
      %1599 = vmatpush1.msra.mxu0 %v663
      %1600 = vmatprep.subr.mxu0 0.0
      %1601 = vmatpush1.msra.mxu0 %v664
      %1602 = vmatprep.subr.mxu0 0.0
      %1603 = vmatpush1.msra.mxu0 %v665
      %1604 = vmatprep.subr.mxu0 0.0
      %1605 = vmatpush1.msra.mxu0 %v666
      %1606 = vmatprep.subr.mxu0 0.0
      %1607 = vmatpush1.msra.mxu0 0.0
      %1608 = vmatprep.subr.mxu0 0.0
      %1609 = vmatpush1.msra.mxu0 0.0
      %1610 = vmatprep.subr.mxu0 0.0
      %1611 = vmatpush1.msra.mxu0 0.0
      %1612 = vmatprep.subr.mxu0 0.0
      %1613 = vmatpush1.msra.mxu0 0.0
      %1614 = vmatprep.subr.mxu0 0.0
      %1615 = vmatpush1.msra.mxu0 0.0
      %1616 = vmatprep.subr.mxu0 0.0
      %1617 = vmatpush1.msra.mxu0 0.0
      %1618 = vmatprep.subr.mxu0 0.0
      %1619 = vmatpush1.msra.mxu0 0.0
      %1620 = vmatprep.subr.mxu0 0.0
      %1621 = vmatpush1.msra.mxu0 0.0
      %1622 = vmatprep.subr.mxu0 0.0
      %1623 = vmatpush1.msra.mxu0 0.0
      %1624 = vmatprep.subr.mxu0 0.0
      %1625 = vmatpush1.msra.mxu0 0.0
      %1626 = vmatprep.subr.mxu0 0.0
      %1627 = vmatpush1.msra.mxu0 0.0
      %1628 = vmatprep.subr.mxu0 0.0
      %1629 = vmatpush1.msra.mxu0 0.0
      %1630 = vmatprep.subr.mxu0 0.0
      %1631 = vmatpush1.msra.mxu0 0.0
      %1632 = vmatprep.subr.mxu0 0.0
      %1633 = vmatpush1.msra.mxu0 0.0
      %1634 = vmatprep.subr.mxu0 0.0
      %1635 = vmatpush1.msra.mxu0 0.0
      %1636 = vmatprep.subr.mxu0 0.0
      %1637 = vmatpush1.msra.mxu0 0.0
      %1638 = vmatprep.mubr.f32.mxu0 0.0
      %1639 = vmatmul.mubr.f32.gmra.mrb[0].mxu0 %v429
      %v1640 = vpop.f32.mrb[0].mxu0
      %v1641 = vadd.f32 %v1416, %v1640
      %v1642 = vpop.f32.mrb[0].mxu0
      %1643 = vmatprep.mubr.f32.mxu0 0.0
      %1644 = vmatmul.mubr.f32.gmra.mrb[0].mxu0 %v432
      %v1645 = vpop.f32.mrb[0].mxu0
      %v1646 = vadd.f32 %v1421, %v1645
      %v1647 = vpop.f32.mrb[0].mxu0
      %1648 = vmatprep.mubr.f32.mxu0 0.0
      %1649 = vmatmul.mubr.f32.gmra.mrb[0].mxu0 %v435
      %v1650 = vpop.f32.mrb[0].mxu0
      %v1651 = vadd.f32 %v1426, %v1650
      %v1652 = vpop.f32.mrb[0].mxu0
      %1653 = vmatprep.mubr.f32.mxu0 0.0
      %1654 = vmatmul.mubr.f32.gmra.mrb[0].mxu0 %v438
      %v1655 = vpop.f32.mrb[0].mxu0
      %v1656 = vadd.f32 %v1431, %v1655
      %v1657 = vpop.f32.mrb[0].mxu0
      %1658 = vmatprep.mubr.f32.mxu0 0.0
      %1659 = vmatmul.mubr.f32.gmra.mrb[0].mxu0 %v441
      %v1660 = vpop.f32.mrb[0].mxu0
      %v1661 = vadd.f32 %v1436, %v1660
      %v1662 = vpop.f32.mrb[0].mxu0
      %1663 = vmatprep.mubr.f32.mxu0 0.0
      %1664 = vmatmul.mubr.f32.gmra.mrb[0].mxu0 %v444
      %v1665 = vpop.f32.mrb[0].mxu0
      %v1666 = vadd.f32 %v1441, %v1665
      %v1667 = vpop.f32.mrb[0].mxu0
      %1668 = vmatprep.mubr.f32.mxu0 0.0
      %1669 = vmatmul.mubr.f32.gmra.mrb[0].mxu0 %v447
      %v1670 = vpop.f32.mrb[0].mxu0
      %v1671 = vadd.f32 %v1446, %v1670
      %v1672 = vpop.f32.mrb[0].mxu0
      %1673 = vmatprep.mubr.f32.mxu0 0.0
      %1674 = vmatmul.mubr.f32.gmra.mrb[0].mxu0 %v450
      %v1675 = vpop.f32.mrb[0].mxu0
      %v1676 = vadd.f32 %v1451, %v1675
      %v1677 = vpop.f32.mrb[0].mxu0
      %1678 = vmatprep.mubr.f32.mxu0 0.0
      %1679 = vmatmul.mubr.f32.gmra.mrb[0].mxu0 %v453
      %v1680 = vpop.f32.mrb[0].mxu0
      %v1681 = vadd.f32 %v1456, %v1680
      %v1682 = vpop.f32.mrb[0].mxu0
      %1683 = vmatprep.mubr.f32.mxu0 0.0
      %1684 = vmatmul.mubr.f32.gmra.mrb[0].mxu0 %v456
      %v1685 = vpop.f32.mrb[0].mxu0
      %v1686 = vadd.f32 %v1461, %v1685
      %v1687 = vpop.f32.mrb[0].mxu0
      %1688 = vmatprep.mubr.f32.mxu0 0.0
      %1689 = vmatmul.mubr.f32.gmra.mrb[0].mxu0 %v459
      %v1690 = vpop.f32.mrb[0].mxu0
      %v1691 = vadd.f32 %v1466, %v1690
      %v1692 = vpop.f32.mrb[0].mxu0
      %1693 = vmatprep.mubr.f32.mxu0 0.0
      %1694 = vmatmul.mubr.f32.gmra.mrb[0].mxu0 %v462
      %v1695 = vpop.f32.mrb[0].mxu0
      %v1696 = vadd.f32 %v1471, %v1695
      %v1697 = vpop.f32.mrb[0].mxu0
      %1698 = vmatprep.mubr.f32.mxu0 0.0
      %1699 = vmatmul.mubr.f32.gmra.mrb[0].mxu0 %v465
      %v1700 = vpop.f32.mrb[0].mxu0
      %v1701 = vadd.f32 %v1476, %v1700
      %v1702 = vpop.f32.mrb[0].mxu0
      %1703 = vmatprep.mubr.f32.mxu0 0.0
      %1704 = vmatmul.mubr.f32.gmra.mrb[0].mxu0 %v468
      %v1705 = vpop.f32.mrb[0].mxu0
      %v1706 = vadd.f32 %v1481, %v1705
      %v1707 = vpop.f32.mrb[0].mxu0
      %1708 = vmatprep.mubr.f32.mxu0 0.0
      %1709 = vmatmul.mubr.f32.gmra.mrb[0].mxu0 %v471
      %v1710 = vpop.f32.mrb[0].mxu0
      %v1711 = vadd.f32 %v1486, %v1710
      %v1712 = vpop.f32.mrb[0].mxu0
      %1713 = vmatprep.mubr.f32.mxu0 0.0
      %1714 = vmatmul.mubr.f32.gmra.mrb[0].mxu0 %v474
      %v1715 = vpop.f32.mrb[0].mxu0
      %v1716 = vadd.f32 %v1491, %v1715
      %v1717 = vpop.f32.mrb[0].mxu0
      %1718 = vmatprep.mubr.f32.mxu0 0.0
      %1719 = vmatmul.mubr.f32.gmra.mrb[0].mxu0 %v477
      %v1720 = vpop.f32.mrb[0].mxu0
      %v1721 = vadd.f32 %v1496, %v1720
      %v1722 = vpop.f32.mrb[0].mxu0
      %1723 = vmatprep.mubr.f32.mxu0 0.0
      %1724 = vmatmul.mubr.f32.gmra.mrb[0].mxu0 %v480
      %v1725 = vpop.f32.mrb[0].mxu0
      %v1726 = vadd.f32 %v1501, %v1725
      %v1727 = vpop.f32.mrb[0].mxu0
      %1728 = vmatprep.mubr.f32.mxu0 0.0
      %1729 = vmatmul.mubr.f32.gmra.mrb[0].mxu0 %v483
      %v1730 = vpop.f32.mrb[0].mxu0
      %v1731 = vadd.f32 %v1506, %v1730
      %v1732 = vpop.f32.mrb[0].mxu0
      %1733 = vmatprep.mubr.f32.mxu0 0.0
      %1734 = vmatmul.mubr.f32.gmra.mrb[0].mxu0 %v486
      %v1735 = vpop.f32.mrb[0].mxu0
      %v1736 = vadd.f32 %v1511, %v1735
      %v1737 = vpop.f32.mrb[0].mxu0
      %1738 = vmatprep.mubr.f32.mxu0 0.0
      %1739 = vmatmul.mubr.f32.gmra.mrb[0].mxu0 %v489
      %v1740 = vpop.f32.mrb[0].mxu0
      %v1741 = vadd.f32 %v1516, %v1740
      %v1742 = vpop.f32.mrb[0].mxu0
      %1743 = vmatprep.mubr.f32.mxu0 0.0
      %1744 = vmatmul.mubr.f32.gmra.mrb[0].mxu0 %v492
      %v1745 = vpop.f32.mrb[0].mxu0
      %v1746 = vadd.f32 %v1521, %v1745
      %v1747 = vpop.f32.mrb[0].mxu0
      %1748 = vmatprep.mubr.f32.mxu0 0.0
      %1749 = vmatmul.mubr.f32.gmra.mrb[0].mxu0 %v495
      %v1750 = vpop.f32.mrb[0].mxu0
      %v1751 = vadd.f32 %v1526, %v1750
      %v1752 = vpop.f32.mrb[0].mxu0
      %1753 = vmatprep.mubr.f32.mxu0 0.0
      %1754 = vmatmul.mubr.f32.gmra.mrb[0].mxu0 %v498
      %v1755 = vpop.f32.mrb[0].mxu0
      %v1756 = vadd.f32 %v1531, %v1755
      %v1757 = vpop.f32.mrb[0].mxu0
      %1758 = vmatprep.mubr.f32.mxu0 0.0
      %1759 = vmatmul.mubr.f32.gmra.mrb[0].mxu0 %v501
      %v1760 = vpop.f32.mrb[0].mxu0
      %v1761 = vadd.f32 %v1536, %v1760
      %v1762 = vpop.f32.mrb[0].mxu0
      %1763 = vmatprep.mubr.f32.mxu0 0.0
      %1764 = vmatmul.mubr.f32.gmra.mrb[0].mxu0 %v504
      %v1765 = vpop.f32.mrb[0].mxu0
      %v1766 = vadd.f32 %v1541, %v1765
      %v1767 = vpop.f32.mrb[0].mxu0
      %1768 = vmatprep.mubr.f32.mxu0 0.0
      %1769 = vmatmul.mubr.f32.gmra.mrb[0].mxu0 %v507
      %v1770 = vpop.f32.mrb[0].mxu0
      %v1771 = vadd.f32 %v1546, %v1770
      %v1772 = vpop.f32.mrb[0].mxu0
      %1773 = vmatprep.mubr.f32.mxu0 0.0
      %1774 = vmatmul.mubr.f32.gmra.mrb[0].mxu0 %v510
      %v1775 = vpop.f32.mrb[0].mxu0
      %v1776 = vadd.f32 %v1551, %v1775
      %v1777 = vpop.f32.mrb[0].mxu0
      %1778 = vmatprep.mubr.f32.mxu0 0.0
      %1779 = vmatmul.mubr.f32.gmra.mrb[0].mxu0 %v513
      %v1780 = vpop.f32.mrb[0].mxu0
      %v1781 = vadd.f32 %v1556, %v1780
      %v1782 = vpop.f32.mrb[0].mxu0
      %1783 = vmatprep.mubr.f32.mxu0 0.0
      %1784 = vmatmul.mubr.f32.gmra.mrb[0].mxu0 %v516
      %v1785 = vpop.f32.mrb[0].mxu0
      %v1786 = vadd.f32 %v1561, %v1785
      %v1787 = vpop.f32.mrb[0].mxu0
      %1788 = vmatprep.mubr.f32.mxu0 0.0
      %1789 = vmatmul.mubr.f32.gmra.mrb[0].mxu0 %v519
      %v1790 = vpop.f32.mrb[0].mxu0
      %v1791 = vadd.f32 %v1566, %v1790
      %v1792 = vpop.f32.mrb[0].mxu0
      %1793 = vmatprep.mubr.f32.mxu0 0.0
      %1794 = vmatmul.mubr.f32.gmra.mrb[0].mxu0 %v522
      %v1795 = vpop.f32.mrb[0].mxu0
      %v1796 = vadd.f32 %v1571, %v1795
      %v1797 = vpop.f32.mrb[0].mxu0
      %1798 = vdwg.mxu0
      %v1799 = vld [vmem:[%s3] sm:$0xff]
      %v1800 = vld [vmem:[%s3 + $0x8] sm:$0xff]
      %v1801 = vld [vmem:[%s3 + $0x10] sm:$0xff]
      %v1802 = vld [vmem:[%s3 + $0x18] sm:$0xff]
      %v1803 = vld [vmem:[%s3 + $0x20] sm:$0xff]
      %v1804 = vld [vmem:[%s3 + $0x28] sm:$0xff]
      %v1805 = vld [vmem:[%s3 + $0x30] sm:$0xff]
      %v1806 = vld [vmem:[%s3 + $0x38] sm:$0xff]
      %v1807 = vld [vmem:[%s4] sm:$0x1]
      %v1809 = vlaneseq
      %v1810 = vshrl.u32 %v1809, 7
      %v1811 = vsub.s32 0, %v1810
      %v1812 = vrot.slane %v1807, %v1811
      %vm1814 = vcmask 523264
      %v1816 = vsel %vm1814, %v1641, 0
      %v1819 = vsel %vm1814, %v1646, 0
      %v1822 = vsel %vm1814, %v1651, 0
      %v1825 = vsel %vm1814, %v1656, 0
      %v1828 = vsel %vm1814, %v1661, 0
      %v1831 = vsel %vm1814, %v1666, 0
      %v1834 = vsel %vm1814, %v1671, 0
      %v1837 = vsel %vm1814, %v1676, 0
      %v1840 = vsel %vm1814, %v1681, 0
      %v1843 = vsel %vm1814, %v1686, 0
      %v1846 = vsel %vm1814, %v1691, 0
      %v1849 = vsel %vm1814, %v1696, 0
      %v1852 = vsel %vm1814, %v1701, 0
      %v1855 = vsel %vm1814, %v1706, 0
      %v1858 = vsel %vm1814, %v1711, 0
      %v1861 = vsel %vm1814, %v1716, 0
      %v1864 = vsel %vm1814, %v1721, 0
      %v1867 = vsel %vm1814, %v1726, 0
      %v1870 = vsel %vm1814, %v1731, 0
      %v1873 = vsel %vm1814, %v1736, 0
      %v1876 = vsel %vm1814, %v1741, 0
      %v1879 = vsel %vm1814, %v1746, 0
      %v1882 = vsel %vm1814, %v1751, 0
      %v1885 = vsel %vm1814, %v1756, 0
      %v1888 = vsel %vm1814, %v1761, 0
      %v1891 = vsel %vm1814, %v1766, 0
      %v1894 = vsel %vm1814, %v1771, 0
      %v1897 = vsel %vm1814, %v1776, 0
      %v1900 = vsel %vm1814, %v1781, 0
      %v1903 = vsel %vm1814, %v1786, 0
      %v1906 = vsel %vm1814, %v1791, 0
      %v1909 = vsel %vm1814, %v1796, 0
      %1911 = vmatprep.subr.mxu0 0.0
      %1912 = vmatpush1.msra.mxu0 %v1799
      %1913 = vmatprep.subr.mxu0 0.0
      %1914 = vmatpush1.msra.mxu0 %v1800
      %1915 = vmatprep.subr.mxu0 0.0
      %1916 = vmatpush1.msra.mxu0 %v1801
      %1917 = vmatprep.subr.mxu0 0.0
      %1918 = vmatpush1.msra.mxu0 %v1802
      %1919 = vmatprep.subr.mxu0 0.0
      %1920 = vmatpush1.msra.mxu0 %v1803
      %1921 = vmatprep.subr.mxu0 0.0
      %1922 = vmatpush1.msra.mxu0 %v1804
      %1923 = vmatprep.subr.mxu0 0.0
      %1924 = vmatpush1.msra.mxu0 %v1805
      %1925 = vmatprep.subr.mxu0 0.0
      %1926 = vmatpush1.msra.mxu0 %v1806
      %1927 = vmatprep.subr.mxu0 0.0
      %1928 = vmatpush1.msra.mxu0 0.0
      %1929 = vmatprep.subr.mxu0 0.0
      %1930 = vmatpush1.msra.mxu0 0.0
      %1931 = vmatprep.subr.mxu0 0.0
      %1932 = vmatpush1.msra.mxu0 0.0
      %1933 = vmatprep.subr.mxu0 0.0
      %1934 = vmatpush1.msra.mxu0 0.0
      %1935 = vmatprep.subr.mxu0 0.0
      %1936 = vmatpush1.msra.mxu0 0.0
      %1937 = vmatprep.subr.mxu0 0.0
      %1938 = vmatpush1.msra.mxu0 0.0
      %1939 = vmatprep.subr.mxu0 0.0
      %1940 = vmatpush1.msra.mxu0 0.0
      %1941 = vmatprep.subr.mxu0 0.0
      %1942 = vmatpush1.msra.mxu0 0.0
      %1943 = vmatprep.subr.mxu0 0.0
      %1944 = vmatpush1.msra.mxu0 0.0
      %1945 = vmatprep.subr.mxu0 0.0
      %1946 = vmatpush1.msra.mxu0 0.0
      %1947 = vmatprep.subr.mxu0 0.0
      %1948 = vmatpush1.msra.mxu0 0.0
      %1949 = vmatprep.subr.mxu0 0.0
      %1950 = vmatpush1.msra.mxu0 0.0
      %1951 = vmatprep.subr.mxu0 0.0
      %1952 = vmatpush1.msra.mxu0 0.0
      %1953 = vmatprep.subr.mxu0 0.0
      %1954 = vmatpush1.msra.mxu0 0.0
      %1955 = vmatprep.subr.mxu0 0.0
      %1956 = vmatpush1.msra.mxu0 0.0
      %1957 = vmatprep.subr.mxu0 0.0
      %1958 = vmatpush1.msra.mxu0 0.0
      %1959 = vmatprep.subr.mxu0 0.0
      %1960 = vmatpush1.msra.mxu0 0.0
      %1961 = vmatprep.subr.mxu0 0.0
      %1962 = vmatpush1.msra.mxu0 0.0
      %1963 = vmatprep.subr.mxu0 0.0
      %1964 = vmatpush1.msra.mxu0 0.0
      %1965 = vmatprep.subr.mxu0 0.0
      %1966 = vmatpush1.msra.mxu0 0.0
      %1967 = vmatprep.subr.mxu0 0.0
      %1968 = vmatpush1.msra.mxu0 0.0
      %1969 = vmatprep.subr.mxu0 0.0
      %1970 = vmatpush1.msra.mxu0 0.0
      %1971 = vmatprep.subr.mxu0 0.0
      %1972 = vmatpush1.msra.mxu0 0.0
      %1973 = vmatprep.subr.mxu0 0.0
      %1974 = vmatpush1.msra.mxu0 0.0
      %1975 = vmatprep.mubr.f32.mxu0 0.0
      %1976 = vmatmul.mubr.f32.gmra.mrb[0].mxu0 %v1816
      %v1977 = vpop.f32.mrb[0].mxu0
      %v1978 = vadd.f32 %v1812, %v1977
      %v1979 = vpop.f32.mrb[0].mxu0
      %1980 = vmatprep.mubr.f32.mxu0 0.0
      %1981 = vmatmul.mubr.f32.gmra.mrb[0].mxu0 %v1819
      %v1982 = vpop.f32.mrb[0].mxu0
      %v1983 = vadd.f32 %v1812, %v1982
      %v1984 = vpop.f32.mrb[0].mxu0
      %1985 = vmatprep.mubr.f32.mxu0 0.0
      %1986 = vmatmul.mubr.f32.gmra.mrb[0].mxu0 %v1822
      %v1987 = vpop.f32.mrb[0].mxu0
      %v1988 = vadd.f32 %v1812, %v1987
      %v1989 = vpop.f32.mrb[0].mxu0
      %1990 = vmatprep.mubr.f32.mxu0 0.0
      %1991 = vmatmul.mubr.f32.gmra.mrb[0].mxu0 %v1825
      %v1992 = vpop.f32.mrb[0].mxu0
      %v1993 = vadd.f32 %v1812, %v1992
      %v1994 = vpop.f32.mrb[0].mxu0
      %1995 = vmatprep.mubr.f32.mxu0 0.0
      %1996 = vmatmul.mubr.f32.gmra.mrb[0].mxu0 %v1828
      %v1997 = vpop.f32.mrb[0].mxu0
      %v1998 = vadd.f32 %v1812, %v1997
      %v1999 = vpop.f32.mrb[0].mxu0
      %2000 = vmatprep.mubr.f32.mxu0 0.0
      %2001 = vmatmul.mubr.f32.gmra.mrb[0].mxu0 %v1831
      %v2002 = vpop.f32.mrb[0].mxu0
      %v2003 = vadd.f32 %v1812, %v2002
      %v2004 = vpop.f32.mrb[0].mxu0
      %2005 = vmatprep.mubr.f32.mxu0 0.0
      %2006 = vmatmul.mubr.f32.gmra.mrb[0].mxu0 %v1834
      %v2007 = vpop.f32.mrb[0].mxu0
      %v2008 = vadd.f32 %v1812, %v2007
      %v2009 = vpop.f32.mrb[0].mxu0
      %2010 = vmatprep.mubr.f32.mxu0 0.0
      %2011 = vmatmul.mubr.f32.gmra.mrb[0].mxu0 %v1837
      %v2012 = vpop.f32.mrb[0].mxu0
      %v2013 = vadd.f32 %v1812, %v2012
      %v2014 = vpop.f32.mrb[0].mxu0
      %2015 = vmatprep.mubr.f32.mxu0 0.0
      %2016 = vmatmul.mubr.f32.gmra.mrb[0].mxu0 %v1840
      %v2017 = vpop.f32.mrb[0].mxu0
      %v2018 = vadd.f32 %v1812, %v2017
      %v2019 = vpop.f32.mrb[0].mxu0
      %2020 = vmatprep.mubr.f32.mxu0 0.0
      %2021 = vmatmul.mubr.f32.gmra.mrb[0].mxu0 %v1843
      %v2022 = vpop.f32.mrb[0].mxu0
      %v2023 = vadd.f32 %v1812, %v2022
      %v2024 = vpop.f32.mrb[0].mxu0
      %2025 = vmatprep.mubr.f32.mxu0 0.0
      %2026 = vmatmul.mubr.f32.gmra.mrb[0].mxu0 %v1846
      %v2027 = vpop.f32.mrb[0].mxu0
      %v2028 = vadd.f32 %v1812, %v2027
      %v2029 = vpop.f32.mrb[0].mxu0
      %2030 = vmatprep.mubr.f32.mxu0 0.0
      %2031 = vmatmul.mubr.f32.gmra.mrb[0].mxu0 %v1849
      %v2032 = vpop.f32.mrb[0].mxu0
      %v2033 = vadd.f32 %v1812, %v2032
      %v2034 = vpop.f32.mrb[0].mxu0
      %2035 = vmatprep.mubr.f32.mxu0 0.0
      %2036 = vmatmul.mubr.f32.gmra.mrb[0].mxu0 %v1852
      %v2037 = vpop.f32.mrb[0].mxu0
      %v2038 = vadd.f32 %v1812, %v2037
      %v2039 = vpop.f32.mrb[0].mxu0
      %2040 = vmatprep.mubr.f32.mxu0 0.0
      %2041 = vmatmul.mubr.f32.gmra.mrb[0].mxu0 %v1855
      %v2042 = vpop.f32.mrb[0].mxu0
      %v2043 = vadd.f32 %v1812, %v2042
      %v2044 = vpop.f32.mrb[0].mxu0
      %2045 = vmatprep.mubr.f32.mxu0 0.0
      %2046 = vmatmul.mubr.f32.gmra.mrb[0].mxu0 %v1858
      %v2047 = vpop.f32.mrb[0].mxu0
      %v2048 = vadd.f32 %v1812, %v2047
      %v2049 = vpop.f32.mrb[0].mxu0
      %2050 = vmatprep.mubr.f32.mxu0 0.0
      %2051 = vmatmul.mubr.f32.gmra.mrb[0].mxu0 %v1861
      %v2052 = vpop.f32.mrb[0].mxu0
      %v2053 = vadd.f32 %v1812, %v2052
      %v2054 = vpop.f32.mrb[0].mxu0
      %2055 = vmatprep.mubr.f32.mxu0 0.0
      %2056 = vmatmul.mubr.f32.gmra.mrb[0].mxu0 %v1864
      %v2057 = vpop.f32.mrb[0].mxu0
      %v2058 = vadd.f32 %v1812, %v2057
      %v2059 = vpop.f32.mrb[0].mxu0
      %2060 = vmatprep.mubr.f32.mxu0 0.0
      %2061 = vmatmul.mubr.f32.gmra.mrb[0].mxu0 %v1867
      %v2062 = vpop.f32.mrb[0].mxu0
      %v2063 = vadd.f32 %v1812, %v2062
      %v2064 = vpop.f32.mrb[0].mxu0
      %2065 = vmatprep.mubr.f32.mxu0 0.0
      %2066 = vmatmul.mubr.f32.gmra.mrb[0].mxu0 %v1870
      %v2067 = vpop.f32.mrb[0].mxu0
      %v2068 = vadd.f32 %v1812, %v2067
      %v2069 = vpop.f32.mrb[0].mxu0
      %2070 = vmatprep.mubr.f32.mxu0 0.0
      %2071 = vmatmul.mubr.f32.gmra.mrb[0].mxu0 %v1873
      %v2072 = vpop.f32.mrb[0].mxu0
      %v2073 = vadd.f32 %v1812, %v2072
      %v2074 = vpop.f32.mrb[0].mxu0
      %2075 = vmatprep.mubr.f32.mxu0 0.0
      %2076 = vmatmul.mubr.f32.gmra.mrb[0].mxu0 %v1876
      %v2077 = vpop.f32.mrb[0].mxu0
      %v2078 = vadd.f32 %v1812, %v2077
      %v2079 = vpop.f32.mrb[0].mxu0
      %2080 = vmatprep.mubr.f32.mxu0 0.0
      %2081 = vmatmul.mubr.f32.gmra.mrb[0].mxu0 %v1879
      %v2082 = vpop.f32.mrb[0].mxu0
      %v2083 = vadd.f32 %v1812, %v2082
      %v2084 = vpop.f32.mrb[0].mxu0
      %2085 = vmatprep.mubr.f32.mxu0 0.0
      %2086 = vmatmul.mubr.f32.gmra.mrb[0].mxu0 %v1882
      %v2087 = vpop.f32.mrb[0].mxu0
      %v2088 = vadd.f32 %v1812, %v2087
      %v2089 = vpop.f32.mrb[0].mxu0
      %2090 = vmatprep.mubr.f32.mxu0 0.0
      %2091 = vmatmul.mubr.f32.gmra.mrb[0].mxu0 %v1885
      %v2092 = vpop.f32.mrb[0].mxu0
      %v2093 = vadd.f32 %v1812, %v2092
      %v2094 = vpop.f32.mrb[0].mxu0
      %2095 = vmatprep.mubr.f32.mxu0 0.0
      %2096 = vmatmul.mubr.f32.gmra.mrb[0].mxu0 %v1888
      %v2097 = vpop.f32.mrb[0].mxu0
      %v2098 = vadd.f32 %v1812, %v2097
      %v2099 = vpop.f32.mrb[0].mxu0
      %2100 = vmatprep.mubr.f32.mxu0 0.0
      %2101 = vmatmul.mubr.f32.gmra.mrb[0].mxu0 %v1891
      %v2102 = vpop.f32.mrb[0].mxu0
      %v2103 = vadd.f32 %v1812, %v2102
      %v2104 = vpop.f32.mrb[0].mxu0
      %2105 = vmatprep.mubr.f32.mxu0 0.0
      %2106 = vmatmul.mubr.f32.gmra.mrb[0].mxu0 %v1894
      %v2107 = vpop.f32.mrb[0].mxu0
      %v2108 = vadd.f32 %v1812, %v2107
      %v2109 = vpop.f32.mrb[0].mxu0
      %2110 = vmatprep.mubr.f32.mxu0 0.0
      %2111 = vmatmul.mubr.f32.gmra.mrb[0].mxu0 %v1897
      %v2112 = vpop.f32.mrb[0].mxu0
      %v2113 = vadd.f32 %v1812, %v2112
      %v2114 = vpop.f32.mrb[0].mxu0
      %2115 = vmatprep.mubr.f32.mxu0 0.0
      %2116 = vmatmul.mubr.f32.gmra.mrb[0].mxu0 %v1900
      %v2117 = vpop.f32.mrb[0].mxu0
      %v2118 = vadd.f32 %v1812, %v2117
      %v2119 = vpop.f32.mrb[0].mxu0
      %2120 = vmatprep.mubr.f32.mxu0 0.0
      %2121 = vmatmul.mubr.f32.gmra.mrb[0].mxu0 %v1903
      %v2122 = vpop.f32.mrb[0].mxu0
      %v2123 = vadd.f32 %v1812, %v2122
      %v2124 = vpop.f32.mrb[0].mxu0
      %2125 = vmatprep.mubr.f32.mxu0 0.0
      %2126 = vmatmul.mubr.f32.gmra.mrb[0].mxu0 %v1906
      %v2127 = vpop.f32.mrb[0].mxu0
      %v2128 = vadd.f32 %v1812, %v2127
      %v2129 = vpop.f32.mrb[0].mxu0
      %2130 = vmatprep.mubr.f32.mxu0 0.0
      %2131 = vmatmul.mubr.f32.gmra.mrb[0].mxu0 %v1909
      %v2132 = vpop.f32.mrb[0].mxu0
      %v2133 = vadd.f32 %v1812, %v2132
      %v2134 = vpop.f32.mrb[0].mxu0
      %2135 = vdwg.mxu0
      %vm2136 = vcmask 261120
      %2137 = vst.msk [vmem:[%s231] sm:$0xff] %vm2136, %v1978
      %2138 = vst.msk [vmem:[%s231 + $0x8] sm:$0xff] %vm2136, %v1983
      %2139 = vst.msk [vmem:[%s231 + $0x10] sm:$0xff] %vm2136, %v1988
      %2140 = vst.msk [vmem:[%s231 + $0x18] sm:$0xff] %vm2136, %v1993
      %2141 = vst.msk [vmem:[%s231 + $0x20] sm:$0xff] %vm2136, %v1998
      %2142 = vst.msk [vmem:[%s231 + $0x28] sm:$0xff] %vm2136, %v2003
      %2143 = vst.msk [vmem:[%s231 + $0x30] sm:$0xff] %vm2136, %v2008
      %2144 = vst.msk [vmem:[%s231 + $0x38] sm:$0xff] %vm2136, %v2013
      %2145 = vst.msk [vmem:[%s231 + $0x40] sm:$0xff] %vm2136, %v2018
      %2146 = vst.msk [vmem:[%s231 + $0x48] sm:$0xff] %vm2136, %v2023
      %2147 = vst.msk [vmem:[%s231 + $0x50] sm:$0xff] %vm2136, %v2028
      %2148 = vst.msk [vmem:[%s231 + $0x58] sm:$0xff] %vm2136, %v2033
      %2149 = vst.msk [vmem:[%s231 + $0x60] sm:$0xff] %vm2136, %v2038
      %2150 = vst.msk [vmem:[%s231 + $0x68] sm:$0xff] %vm2136, %v2043
      %2151 = vst.msk [vmem:[%s231 + $0x70] sm:$0xff] %vm2136, %v2048
      %2152 = vst.msk [vmem:[%s231 + $0x78] sm:$0xff] %vm2136, %v2053
      %2153 = vst.msk [vmem:[%s231 + $0x80] sm:$0xff] %vm2136, %v2058
      %2154 = vst.msk [vmem:[%s231 + $0x88] sm:$0xff] %vm2136, %v2063
      %2155 = vst.msk [vmem:[%s231 + $0x90] sm:$0xff] %vm2136, %v2068
      %2156 = vst.msk [vmem:[%s231 + $0x98] sm:$0xff] %vm2136, %v2073
      %2157 = vst.msk [vmem:[%s231 + $0xa0] sm:$0xff] %vm2136, %v2078
      %2158 = vst.msk [vmem:[%s231 + $0xa8] sm:$0xff] %vm2136, %v2083
      %2159 = vst.msk [vmem:[%s231 + $0xb0] sm:$0xff] %vm2136, %v2088
      %2160 = vst.msk [vmem:[%s231 + $0xb8] sm:$0xff] %vm2136, %v2093
      %2161 = vst.msk [vmem:[%s231 + $0xc0] sm:$0xff] %vm2136, %v2098
      %2162 = vst.msk [vmem:[%s231 + $0xc8] sm:$0xff] %vm2136, %v2103
      %2163 = vst.msk [vmem:[%s231 + $0xd0] sm:$0xff] %vm2136, %v2108
      %2164 = vst.msk [vmem:[%s231 + $0xd8] sm:$0xff] %vm2136, %v2113
      %2165 = vst.msk [vmem:[%s231 + $0xe0] sm:$0xff] %vm2136, %v2118
      %2166 = vst.msk [vmem:[%s231 + $0xe8] sm:$0xff] %vm2136, %v2123
      %2167 = vst.msk [vmem:[%s231 + $0xf0] sm:$0xff] %vm2136, %v2128
      %2168 = vst.msk [vmem:[%s231 + $0xf8] sm:$0xff] %vm2136, %v2133
      %s2169 = smul.u32 4, %s16
      %p2170 = scmp.lt.s32.totalorder %s2169, 7
      %s2171 = scalar_select %p2170, %s2169, 7
      %s2172 = smul.addr %s2171, 8
      %s2173 = smul.addr %s2172, 8
      %s2174 = scalar_lea.vmem %s5, %s2173
      // Predicated region
      $region41: #{model_forward.1} parent=39 // pred_check
        %p2175 = pneg %p144
      $region42: #{model_forward.1} parent=39 // pred_check_branch
        %2177 = sbr.rel (%p2175) target = $region44
      $region43: #{model_forward.1} parent=39 // pred_region
        %s2178 = smul.u32 4, %s16
      $region44: #{model_forward.1} parent=39 // pred_fallthru
        _
    $region40: #{model_forward.1} parent=5 // pred_fallthru
      _
    %p2179 = scmp.le.s32.totalorder 2, %s11
    // Predicated region
    $region45: #{model_forward.1} parent=5 // pred_check
      %p2180 = pneg %p2179
    $region46: #{model_forward.1} parent=5 // pred_check_branch
      %2182 = sbr.rel (%p2180) target = $region48
    $region47: #{model_forward.1} parent=5 // pred_region
      %s2183 = ssub.s32 %s11, 2
      // Predicated region
      $region49: #{model_forward.1} parent=47 // pred_check
        %p2184 = pneg %p150
      $region50: #{model_forward.1} parent=47 // pred_check_branch
        %2186 = sbr.rel (%p2184) target = $region52
      $region51: #{model_forward.1} parent=47 // pred_region
        %s2187 = smul.u32 4, %s17
        %p2188 = scmp.lt.s32.totalorder %s2187, 7
        %s2189 = scalar_select %p2188, %s2187, 7
        %s2190 = smul.addr %s2189, 8
        %s2191 = smul.addr %s2190, 8
        %s2192 = scalar_lea.vmem %s5, %s2191
      $region52: #{model_forward.1} parent=47 // pred_fallthru
        _
    $region48: #{model_forward.1} parent=5 // pred_fallthru
      _
  $region6: #{model_forward.1} parent=0 // loop_footer
    %s15 = sadd.s32 1, %s11
  $region7: #{model_forward.1} parent=0 // loop_footer_branch
    %10 = sbr.rel target = $region3
  $region8: #{model_forward.1} parent=0 // loop_exit
    _

</llo_original>
